<compile_context>
chip_gen: v5e
topology: v5e:2x2
jax: 0.10.0
libtpu: 0.0.40
codegen_flags: <defaults>
</compile_context>

<pallas_src>
import math

import jax
import jax.numpy as jnp
from jax.experimental import pallas as pl
from jax.experimental.pallas import tpu as pltpu

EMBED_DIM = 32
NUM_HEADS = 4
SEQ_LEN = 8
BATCH = 2
EPS = 1e-6

# MXU operand dtype.  bfloat16 is the native MXU input on v5e/v6e/v7x; all
# accumulation and VPU math stays float32.  Set to jnp.float32 for strict
# parity with the f32 PyTorch reference.
MATMUL_DTYPE = jnp.bfloat16

_SEG = 128          # lane-aligned column stride for weight-slab segments
_NEG_INF = -1e30

# ---- weight slab column offsets (all weights pre-transposed, dtype MATMUL_DTYPE)
_PROJ_OFF = 0                 # cols 0:192  = [Wq1*s | Wk1 | Wv1 | Wv2 | Wq2*s | Wk2]
_W1O_OFF = 2 * _SEG           # cols 256:288 = W1o^T
_W2O_OFF = 3 * _SEG           # cols 384:416 = W2o^T
_WF1_OFF = 4 * _SEG           # cols 512:544 = Wf1^T
_WF2_OFF = 5 * _SEG           # cols 640:672 = Wf2^T
_W_COLS = 6 * _SEG

# ---- bias/mask slab row offsets (float32, 128 lanes wide)
_BX_ROW = 0                   # [b1q*s | b1k | b1v | b2v]  (128 lanes, for x rows)
_BE_ROW = 1                   # [b2q*s | b2k]              (64 lanes, for enc rows)
_B1O_ROW, _B2O_ROW, _BF1_ROW, _BF2_ROW = 2, 3, 4, 5
_G1_ROW, _BETA1_ROW, _G2_ROW, _BETA2_ROW, _G3_ROW, _BETA3_ROW = 6, 7, 8, 9, 10, 11
_MASK_ROW = 16                # rows 16:16+N*L = additive batch mask (gridless path)


def _use_batch_grid():
    """True on 2-TensorCore chips (v7x): shard the batch across cores with a
    parallel grid.  On 1-TC chips (v5e/v6e) a grid is only a serial loop plus
    ~0.35us/step overhead, so stay gridless there."""
    try:
        kind = jax.devices()[0].device_kind.lower()
    except Exception:
        return False
    return ("v7" in kind) or ("7x" in kind)


def _make_kernel(L, nb, E, H, mdt):
    """Fused DecoderBlock body.

    nb = batch elements folded into one invocation.  Rows are l-major /
    n-minor when nb > 1, so rows r1, r2 belong to the same batch element iff
    r1 % nb == r2 % nb (enforced with the precomputed additive mask).
    """
    D = E // H
    R = nb * L          # rows per activation stream (x rows == enc rows == R)

    def kernel(xe_ref, w_ref, b_ref, o_ref):
        xe = xe_ref[...]                                   # (2R, E) f32, [x ; enc]
        x = xe[0:R, :]

        # ---- fused in-projection: ONE MXU matmul for Q1,K1,V1,V2,Q2,K2 -------
        proj = jnp.dot(xe.astype(mdt), w_ref[:, _PROJ_OFF:_PROJ_OFF + 6 * E],
                       preferred_element_type=jnp.float32)           # (2R, 6E)
        # x rows use cols 0:128 (lane-dense), enc rows use cols 128:192.
        px = proj[0:R, 0:4 * E] + b_ref[_BX_ROW:_BX_ROW + 1, 0:4 * E]       # (R, 4E)
        pe = proj[R:2 * R, 4 * E:6 * E] + b_ref[_BE_ROW:_BE_ROW + 1, 0:2 * E]  # (R, 2E)

        mask = b_ref[_MASK_ROW:_MASK_ROW + R, 0:R] if nb > 1 else None   # (R, R)

        def heads(src, off):                               # (R, ·) -> (H, R, D)
            return jnp.stack([src[:, off + h * D: off + (h + 1) * D]
                              for h in range(H)], axis=0)

        def wo_heads(off):                                 # -> (H, D, E), dtype mdt
            return jnp.stack([w_ref[h * D:(h + 1) * D, off:off + E]
                              for h in range(H)], axis=0)

        def layer_norm(y, g_row, beta_row):
            # var = E[y^2] - mu^2: the two lane reductions are independent.
            mu = jnp.mean(y, axis=-1, keepdims=True)
            ms = jnp.mean(y * y, axis=-1, keepdims=True)
            var = jnp.maximum(ms - mu * mu, 0.0)
            return ((y - mu) * jax.lax.rsqrt(var + EPS)
                    * b_ref[g_row:g_row + 1, 0:E]
                    + b_ref[beta_row:beta_row + 1, 0:E])

        def mha(qh, kh, vh, wo_off, bo_row):
            # qh already carries the folded 1/sqrt(D) scale (in Wq / bq).
            s = jnp.einsum("hld,hmd->hlm", qh.astype(mdt), kh.astype(mdt),
                           preferred_element_type=jnp.float32)        # (H, R, R)
            if mask is not None:
                s = s + mask                      # block-diagonal batch separation
            s = s - jnp.max(s, axis=-1, keepdims=True)
            p = jnp.exp(s)
            p = p * pl.reciprocal(jnp.sum(p, axis=-1, keepdims=True), approx=True)
            c = jnp.einsum("hlm,hmd->hld", p.astype(mdt), vh.astype(mdt),
                           preferred_element_type=jnp.float32)        # (H, R, D)
            # Head merge folded into the out-projection: batched (H,R,D)@(H,D,E),
            # summed over heads with unrolled adds (bias used as the initializer).
            oh = jnp.einsum("hld,hde->hle", c.astype(mdt), wo_heads(wo_off),
                            preferred_element_type=jnp.float32)       # (H, R, E)
            out = b_ref[bo_row:bo_row + 1, 0:E]
            for h in range(H):
                out = out + oh[h]
            return out

        # ---- self attention (q = k = v = x) ----------------------------------
        att1 = mha(heads(px, 0), heads(px, E), heads(px, 2 * E),
                   _W1O_OFF, _B1O_ROW)
        out1 = layer_norm(att1 + x, _G1_ROW, _BETA1_ROW)

        # ---- cross attention (q = k = encoded_x, v = x) -----------------------
        att2 = mha(heads(pe, 0), heads(pe, E), heads(px, 3 * E),
                   _W2O_OFF, _B2O_ROW)
        out2 = layer_norm(att2 + out1, _G2_ROW, _BETA2_ROW)

        # ---- feed forward: Linear -> ReLU -> Linear ----------------------------
        hid = jnp.maximum(
            jnp.dot(out2.astype(mdt), w_ref[:, _WF1_OFF:_WF1_OFF + E],
                    preferred_element_type=jnp.float32)
            + b_ref[_BF1_ROW:_BF1_ROW + 1, 0:E], 0.0)
        ffn = (jnp.dot(hid.astype(mdt), w_ref[:, _WF2_OFF:_WF2_OFF + E],
                       preferred_element_type=jnp.float32)
               + b_ref[_BF2_ROW:_BF2_ROW + 1, 0:E])
        out3 = layer_norm(ffn + out2, _G3_ROW, _BETA3_ROW)

        o_ref[...] = out3.astype(o_ref.dtype)

    return kernel


def prepare_decoder_params(params, num_heads=NUM_HEADS, seq_len=SEQ_LEN,
                           batch=BATCH, matmul_dtype=MATMUL_DTYPE):
    """One-time packing (hoisted out of the per-call path).

    Pre-transposes all weights, folds the 1/sqrt(D) softmax scale into Wq/bq,
    packs the 6 weight matrices into one lane-aligned (E, 768) slab cast to the
    MXU operand dtype, and packs the 16 bias/gamma/beta vectors plus the batch
    block-diagonal attention mask into one (16 + N*L, 128) float32 slab.
    """
    E = params["w1q"].shape[0]
    D = E // num_heads
    scale = 1.0 / math.sqrt(D)

    def pad_cols(a, width):
        return jnp.pad(a, ((0, 0), (0, width - a.shape[1])))

    proj = jnp.concatenate(
        [params["w1q"].T * scale, params["w1k"].T, params["w1v"].T,
         params["w2v"].T, params["w2q"].T * scale, params["w2k"].T], axis=1)
    w_slab = jnp.concatenate(
        [pad_cols(proj, 2 * _SEG),
         pad_cols(params["w1o"].T, _SEG), pad_cols(params["w2o"].T, _SEG),
         pad_cols(params["wf1"].T, _SEG), pad_cols(params["wf2"].T, _SEG)],
        axis=1).astype(matmul_dtype)                                  # (E, 768)
    assert w_slab.shape == (E, _W_COLS)

    bias_x = pad_cols(jnp.concatenate(
        [params["b1q"] * scale, params["b1k"], params["b1v"], params["b2v"]],
        axis=1), _SEG)                                                # (1, 128)
    bias_e = pad_cols(jnp.concatenate(
        [params["b2q"] * scale, params["b2k"]], axis=1), _SEG)        # (1, 128)
    small = pad_cols(jnp.concatenate(
        [params["b1o"], params["b2o"], params["bf1"], params["bf2"],
         params["g1"], params["beta1"], params["g2"], params["beta2"],
         params["g3"], params["beta3"]], axis=0), _SEG)               # (10, 128)
    pad_rows = jnp.zeros((_MASK_ROW - 12, _SEG), jnp.float32)         # align mask
    nl = seq_len * batch
    r = jnp.arange(nl)
    mask = jnp.where((r[:, None] % batch) == (r[None, :] % batch), 0.0, _NEG_INF)
    mask = pad_cols(mask.astype(jnp.float32), _SEG)                   # (N*L, 128)
    b_slab = jnp.concatenate([bias_x, bias_e, small, pad_rows, mask],
                             axis=0).astype(jnp.float32)              # (16+N*L, 128)

    return {
        "w": w_slab, "b": b_slab,
        "embed_dim": E, "num_heads": num_heads,
        "seq_len": seq_len, "batch": batch,
        "matmul_dtype": matmul_dtype,
        "batch_grid": _use_batch_grid(),
    }


def decoder_block_forward(x_lne, enc_lne, prepared):
    """x_lne, enc_lne: (L, N, E) float32 (PyTorch MHA layout). Returns (L, N, E)."""
    L, N, E = x_lne.shape
    assert enc_lne.shape == (L, N, E)
    assert (L == prepared["seq_len"] and N == prepared["batch"]
            and E == prepared["embed_dim"])
    H = prepared["num_heads"]
    mdt = prepared["matmul_dtype"]
    w_slab, b_slab = prepared["w"], prepared["b"]
    vmem = pl.BlockSpec(memory_space=pltpu.MemorySpace.VMEM)

    if not prepared["batch_grid"]:
        # Single invocation; batch folded into rows. (L, N, E) -> (L*N, E) is a
        # plain row-major reshape (l-major, n-minor rows), so no wrapper-side
        # transposes are needed on inputs or output; batch separation in the
        # attention comes from the precomputed block-diagonal mask.
        xe = jnp.concatenate([x_lne.reshape(L * N, E),
                              enc_lne.reshape(L * N, E)], axis=0)     # (2*N*L, E)
        out2d = pl.pallas_call(
            _make_kernel(L, N, E, H, mdt),
            out_shape=jax.ShapeDtypeStruct((L * N, E), x_lne.dtype),
            in_specs=[vmem, vmem, vmem],
            out_specs=vmem,
        )(xe, w_slab, b_slab)
        # TODO(synk): output rows are only 32 lanes wide (masked stores); a
        # lane-dense relayout would cost more than it saves at this 2 KiB size.
        return out2d.reshape(L, N, E)

    # v7x path: one grid step per batch element, sharded across the two
    # TensorCores; the weight/bias slabs stay resident (constant block index).
    xb = jnp.transpose(x_lne, (1, 0, 2))                               # (N, L, E)
    eb = jnp.transpose(enc_lne, (1, 0, 2))
    xe = jnp.concatenate([xb, eb], axis=1)                             # (N, 2L, E)
    out3 = pl.pallas_call(
        _make_kernel(L, 1, E, H, mdt),
        out_shape=jax.ShapeDtypeStruct((N, L, E), x_lne.dtype),
        grid=(N,),
        in_specs=[pl.BlockSpec((None, 2 * L, E), lambda b: (b, 0, 0)),
                  pl.BlockSpec(w_slab.shape, lambda b: (0, 0)),
                  pl.BlockSpec(b_slab.shape, lambda b: (0, 0))],
        out_specs=pl.BlockSpec((None, L, E), lambda b: (b, 0, 0)),
        compiler_params=pltpu.CompilerParams(dimension_semantics=("parallel",)),
    )(xe, w_slab, b_slab)
    return jnp.transpose(out3, (1, 0, 2))


def init_params(key, E):
    ks = jax.random.split(key, 32)
    i = iter(range(32))

    def w(shape, scale=0.1):
        return (scale * jax.random.normal(ks[next(i)], shape)).astype(jnp.float32)

    p = {}
    for tag in ("1", "2"):  # mha_1, mha_2 (in_proj split into q/k/v, out_proj)
        p[f"w{tag}q"] = w((E, E))
        p[f"w{tag}k"] = w((E, E))
        p[f"w{tag}v"] = w((E, E))
        p[f"b{tag}q"] = w((1, E), 0.02)
        p[f"b{tag}k"] = w((1, E), 0.02)
        p[f"b{tag}v"] = w((1, E), 0.02)
        p[f"w{tag}o"] = w((E, E))
        p[f"b{tag}o"] = w((1, E), 0.02)
    for tag in ("1", "2", "3"):  # layer norms
        p[f"g{tag}"] = jnp.ones((1, E), jnp.float32)
        p[f"beta{tag}"] = jnp.zeros((1, E), jnp.float32)
    p["wf1"] = w((E, E))
    p["bf1"] = w((1, E), 0.02)
    p["wf2"] = w((E, E))
    p["bf2"] = w((1, E), 0.02)
    return p


def reference_forward(x_lne, enc_lne, p, num_heads=NUM_HEADS):
    """Pure-JAX f32 reference mirroring PyTorch semantics (dropout = identity)."""
    L, N, E = x_lne.shape
    D = E // num_heads

    def mha(q_in, k_in, v_in, wq, wk, wv, bq, bk, bv, wo, bo):
        q = q_in @ wq.T + bq
        k = k_in @ wk.T + bk
        v = v_in @ wv.T + bv

        def split(t):
            return t.reshape(L, N, num_heads, D).transpose(1, 2, 0, 3)  # (N,H,L,D)

        qh, kh, vh = split(q), split(k), split(v)
        s = jnp.einsum("nhld,nhmd->nhlm", qh, kh) / math.sqrt(D)
        a = jax.nn.softmax(s, axis=-1)
        ctx = jnp.einsum("nhlm,nhmd->nhld", a, vh)
        ctx = ctx.transpose(2, 0, 1, 3).reshape(L, N, E)
        return ctx @ wo.T + bo

    def ln(y, g, b):
        mu = y.mean(-1, keepdims=True)
        var = ((y - mu) ** 2).mean(-1, keepdims=True)
        return (y - mu) / jnp.sqrt(var + EPS) * g + b

    a1 = mha(x_lne, x_lne, x_lne, p["w1q"], p["w1k"], p["w1v"],
             p["b1q"], p["b1k"], p["b1v"], p["w1o"], p["b1o"])
    out = ln(a1 + x_lne, p["g1"], p["beta1"])
    a2 = mha(enc_lne, enc_lne, x_lne, p["w2q"], p["w2k"], p["w2v"],
             p["b2q"], p["b2k"], p["b2v"], p["w2o"], p["b2o"])
    out = ln(a2 + out, p["g2"], p["beta2"])
    h = jax.nn.relu(out @ p["wf1"].T + p["bf1"])
    f = h @ p["wf2"].T + p["bf2"]
    out = ln(f + out, p["g3"], p["beta3"])
    return out


if __name__ == "__main__":
    key = jax.random.PRNGKey(0)
    kx, ke, kp = jax.random.split(key, 3)

    x = jax.random.normal(kx, (SEQ_LEN, BATCH, EMBED_DIM), jnp.float32)
    enc = jax.random.normal(ke, (SEQ_LEN, BATCH, EMBED_DIM), jnp.float32)
    params = init_params(kp, EMBED_DIM)

    # One-time parameter packing (hoisted out of the per-call path).
    prepared = prepare_decoder_params(params)
    fwd = jax.jit(lambda a, b: decoder_block_forward(a, b, prepared))

    out = jax.block_until_ready(fwd(x, enc))

    assert out.shape == (SEQ_LEN, BATCH, EMBED_DIM)
    assert bool(jnp.all(jnp.isfinite(out)))

    ref = reference_forward(x, enc, params)
    max_err = float(jnp.max(jnp.abs(out - ref)))
    # Tolerance covers bf16 MXU operands, f32 accumulation order and the EUP
    # approx reciprocal in softmax.  An f32 build (MATMUL_DTYPE=float32)
    # meets the tighter 2e-2 bound.
    tol = 5e-2 if MATMUL_DTYPE == jnp.bfloat16 else 2e-2
    assert max_err < tol, f"mismatch vs reference: {max_err}"

    print("KERNEL_OK")
</pallas_src>

<mosaic_0001>
module attributes {stable_mosaic.version = 11 : i64} {
  func.func @kernel(%arg0: memref<32x32xf32, #tpu.memory_space<vmem>>, %arg1: memref<32x768xbf16, #tpu.memory_space<vmem>>, %arg2: memref<32x128xf32, #tpu.memory_space<vmem>>, %arg3: memref<16x32xf32, #tpu.memory_space<vmem>>) attributes {dimension_semantics = [], scalar_prefetch = 0 : i64, scratch_operands = 0 : i64, tpu.core_type = #tpu.core_type<tc>} {
    %c0 = arith.constant 0 : index
    %c0_0 = arith.constant 0 : index
    %0 = vector.load %arg0[%c0, %c0_0] : memref<32x32xf32, #tpu.memory_space<vmem>>, vector<32x32xf32>
    %1 = vector.extract_strided_slice %0 {offsets = [0, 0], sizes = [16, 32], strides = [1, 1]} : vector<32x32xf32> to vector<16x32xf32>
    %2 = arith.truncf %0 : vector<32x32xf32> to vector<32x32xbf16>
    %c0_1 = arith.constant 0 : index
    %c0_2 = arith.constant 0 : index
    %3 = vector.load %arg1[%c0_1, %c0_2] : memref<32x768xbf16, #tpu.memory_space<vmem>>, vector<32x192xbf16>
    %cst = arith.constant dense<0.000000e+00> : vector<32x192xf32>
    %4 = tpu.matmul %2, %3, %cst {dimension_numbers = #tpu.dot_dimension_numbers<[1], [0], [0], [1], [0, 0, 1, 1], [], []>} : vector<32x32xbf16>, vector<32x192xbf16>, vector<32x192xf32> -> vector<32x192xf32>
    %5 = vector.extract_strided_slice %4 {offsets = [0, 0], sizes = [16, 128], strides = [1, 1]} : vector<32x192xf32> to vector<16x128xf32>
    %c0_3 = arith.constant 0 : index
    %c0_4 = arith.constant 0 : index
    %6 = vector.load %arg2[%c0_3, %c0_4] : memref<32x128xf32, #tpu.memory_space<vmem>>, vector<1x128xf32>
    %7 = vector.broadcast %6 : vector<1x128xf32> to vector<16x128xf32>
    %8 = arith.addf %5, %7 : vector<16x128xf32>
    %9 = vector.extract_strided_slice %4 {offsets = [16, 128], sizes = [16, 64], strides = [1, 1]} : vector<32x192xf32> to vector<16x64xf32>
    %c1 = arith.constant 1 : index
    %c0_5 = arith.constant 0 : index
    %10 = vector.load %arg2[%c1, %c0_5] : memref<32x128xf32, #tpu.memory_space<vmem>>, vector<1x64xf32>
    %11 = vector.broadcast %10 : vector<1x64xf32> to vector<16x64xf32>
    %12 = arith.addf %9, %11 : vector<16x64xf32>
    %c16 = arith.constant 16 : index
    %c0_6 = arith.constant 0 : index
    %13 = vector.load %arg2[%c16, %c0_6] : memref<32x128xf32, #tpu.memory_space<vmem>>, vector<16x16xf32>
    %14 = vector.extract_strided_slice %8 {offsets = [0, 0], sizes = [16, 8], strides = [1, 1]} : vector<16x128xf32> to vector<16x8xf32>
    %15 = vector.extract_strided_slice %8 {offsets = [0, 8], sizes = [16, 8], strides = [1, 1]} : vector<16x128xf32> to vector<16x8xf32>
    %16 = vector.extract_strided_slice %8 {offsets = [0, 16], sizes = [16, 8], strides = [1, 1]} : vector<16x128xf32> to vector<16x8xf32>
    %17 = vector.extract_strided_slice %8 {offsets = [0, 24], sizes = [16, 8], strides = [1, 1]} : vector<16x128xf32> to vector<16x8xf32>
    %18 = vector.shape_cast %14 : vector<16x8xf32> to vector<1x16x8xf32>
    %19 = vector.shape_cast %15 : vector<16x8xf32> to vector<1x16x8xf32>
    %20 = vector.shape_cast %16 : vector<16x8xf32> to vector<1x16x8xf32>
    %21 = vector.shape_cast %17 : vector<16x8xf32> to vector<1x16x8xf32>
    %22 = tpu.concatenate %18, %19, %20, %21 in 0 : vector<1x16x8xf32>, vector<1x16x8xf32>, vector<1x16x8xf32>, vector<1x16x8xf32> -> vector<4x16x8xf32>
    %23 = vector.extract_strided_slice %8 {offsets = [0, 32], sizes = [16, 8], strides = [1, 1]} : vector<16x128xf32> to vector<16x8xf32>
    %24 = vector.extract_strided_slice %8 {offsets = [0, 40], sizes = [16, 8], strides = [1, 1]} : vector<16x128xf32> to vector<16x8xf32>
    %25 = vector.extract_strided_slice %8 {offsets = [0, 48], sizes = [16, 8], strides = [1, 1]} : vector<16x128xf32> to vector<16x8xf32>
    %26 = vector.extract_strided_slice %8 {offsets = [0, 56], sizes = [16, 8], strides = [1, 1]} : vector<16x128xf32> to vector<16x8xf32>
    %27 = vector.shape_cast %23 : vector<16x8xf32> to vector<1x16x8xf32>
    %28 = vector.shape_cast %24 : vector<16x8xf32> to vector<1x16x8xf32>
    %29 = vector.shape_cast %25 : vector<16x8xf32> to vector<1x16x8xf32>
    %30 = vector.shape_cast %26 : vector<16x8xf32> to vector<1x16x8xf32>
    %31 = tpu.concatenate %27, %28, %29, %30 in 0 : vector<1x16x8xf32>, vector<1x16x8xf32>, vector<1x16x8xf32>, vector<1x16x8xf32> -> vector<4x16x8xf32>
    %32 = vector.extract_strided_slice %8 {offsets = [0, 64], sizes = [16, 8], strides = [1, 1]} : vector<16x128xf32> to vector<16x8xf32>
    %33 = vector.extract_strided_slice %8 {offsets = [0, 72], sizes = [16, 8], strides = [1, 1]} : vector<16x128xf32> to vector<16x8xf32>
    %34 = vector.extract_strided_slice %8 {offsets = [0, 80], sizes = [16, 8], strides = [1, 1]} : vector<16x128xf32> to vector<16x8xf32>
    %35 = vector.extract_strided_slice %8 {offsets = [0, 88], sizes = [16, 8], strides = [1, 1]} : vector<16x128xf32> to vector<16x8xf32>
    %36 = vector.shape_cast %32 : vector<16x8xf32> to vector<1x16x8xf32>
    %37 = vector.shape_cast %33 : vector<16x8xf32> to vector<1x16x8xf32>
    %38 = vector.shape_cast %34 : vector<16x8xf32> to vector<1x16x8xf32>
    %39 = vector.shape_cast %35 : vector<16x8xf32> to vector<1x16x8xf32>
    %40 = tpu.concatenate %36, %37, %38, %39 in 0 : vector<1x16x8xf32>, vector<1x16x8xf32>, vector<1x16x8xf32>, vector<1x16x8xf32> -> vector<4x16x8xf32>
    %41 = arith.truncf %22 : vector<4x16x8xf32> to vector<4x16x8xbf16>
    %42 = arith.truncf %31 : vector<4x16x8xf32> to vector<4x16x8xbf16>
    "tpu.trace_start"() <{level = 10 : i32, message = "hld,hmd->hlm"}> : () -> ()
    %cst_7 = arith.constant dense<0.000000e+00> : vector<4x16x16xf32>
    %43 = tpu.matmul %41, %42, %cst_7 {dimension_numbers = #tpu.dot_dimension_numbers<[2], [2], [1], [1], [0, 0, 0, 1, 1, 1], [0], [0]>} : vector<4x16x8xbf16>, vector<4x16x8xbf16>, vector<4x16x16xf32> -> vector<4x16x16xf32>
    "tpu.trace_stop"() : () -> ()
    %44 = vector.shape_cast %13 : vector<16x16xf32> to vector<1x16x16xf32>
    %45 = vector.broadcast %44 : vector<1x16x16xf32> to vector<4x16x16xf32>
    %46 = arith.addf %43, %45 : vector<4x16x16xf32>
    %cst_8 = arith.constant dense<0xFF800000> : vector<4x16xf32>
    %47 = vector.multi_reduction <maximumf>, %46, %cst_8 [2] : vector<4x16x16xf32> to vector<4x16xf32>
    %48 = vector.shape_cast %47 : vector<4x16xf32> to vector<4x16x1xf32>
    %49 = vector.broadcast %48 : vector<4x16x1xf32> to vector<4x16x16xf32>
    %50 = arith.subf %46, %49 : vector<4x16x16xf32>
    %51 = math.exp %50 : vector<4x16x16xf32>
    %cst_9 = arith.constant dense<0.000000e+00> : vector<4x16xf32>
    %52 = vector.multi_reduction <add>, %51, %cst_9 [2] : vector<4x16x16xf32> to vector<4x16xf32>
    %53 = vector.shape_cast %52 : vector<4x16xf32> to vector<4x16x1xf32>
    %54 = tpu.reciprocal %53 {approx = true} : vector<4x16x1xf32> -> vector<4x16x1xf32>
    %55 = vector.broadcast %54 : vector<4x16x1xf32> to vector<4x16x16xf32>
    %56 = arith.mulf %51, %55 : vector<4x16x16xf32>
    %57 = arith.truncf %56 : vector<4x16x16xf32> to vector<4x16x16xbf16>
    %58 = arith.truncf %40 : vector<4x16x8xf32> to vector<4x16x8xbf16>
    "tpu.trace_start"() <{level = 10 : i32, message = "hlm,hmd->hld"}> : () -> ()
    %cst_10 = arith.constant dense<0.000000e+00> : vector<4x16x8xf32>
    %59 = tpu.matmul %57, %58, %cst_10 {dimension_numbers = #tpu.dot_dimension_numbers<[2], [1], [1], [2], [0, 0, 0, 1, 1, 2], [0], [0]>} : vector<4x16x16xbf16>, vector<4x16x8xbf16>, vector<4x16x8xf32> -> vector<4x16x8xf32>
    "tpu.trace_stop"() : () -> ()
    %60 = arith.truncf %59 : vector<4x16x8xf32> to vector<4x16x8xbf16>
    %c0_11 = arith.constant 0 : index
    %c256 = arith.constant 256 : index
    %61 = vector.load %arg1[%c0_11, %c256] : memref<32x768xbf16, #tpu.memory_space<vmem>>, vector<8x32xbf16>
    %c8 = arith.constant 8 : index
    %c256_12 = arith.constant 256 : index
    %62 = vector.load %arg1[%c8, %c256_12] : memref<32x768xbf16, #tpu.memory_space<vmem>>, vector<8x32xbf16>
    %c16_13 = arith.constant 16 : index
    %c256_14 = arith.constant 256 : index
    %63 = vector.load %arg1[%c16_13, %c256_14] : memref<32x768xbf16, #tpu.memory_space<vmem>>, vector<8x32xbf16>
    %c24 = arith.constant 24 : index
    %c256_15 = arith.constant 256 : index
    %64 = vector.load %arg1[%c24, %c256_15] : memref<32x768xbf16, #tpu.memory_space<vmem>>, vector<8x32xbf16>
    %65 = vector.shape_cast %61 : vector<8x32xbf16> to vector<1x8x32xbf16>
    %66 = vector.shape_cast %62 : vector<8x32xbf16> to vector<1x8x32xbf16>
    %67 = vector.shape_cast %63 : vector<8x32xbf16> to vector<1x8x32xbf16>
    %68 = vector.shape_cast %64 : vector<8x32xbf16> to vector<1x8x32xbf16>
    %69 = tpu.concatenate %65, %66, %67, %68 in 0 : vector<1x8x32xbf16>, vector<1x8x32xbf16>, vector<1x8x32xbf16>, vector<1x8x32xbf16> -> vector<4x8x32xbf16>
    "tpu.trace_start"() <{level = 10 : i32, message = "hld,hde->hle"}> : () -> ()
    %cst_16 = arith.constant dense<0.000000e+00> : vector<4x16x32xf32>
    %70 = tpu.matmul %60, %69, %cst_16 {dimension_numbers = #tpu.dot_dimension_numbers<[2], [1], [1], [2], [0, 0, 0, 1, 1, 2], [0], [0]>} : vector<4x16x8xbf16>, vector<4x8x32xbf16>, vector<4x16x32xf32> -> vector<4x16x32xf32>
    "tpu.trace_stop"() : () -> ()
    %c2 = arith.constant 2 : index
    %c0_17 = arith.constant 0 : index
    %71 = vector.load %arg2[%c2, %c0_17] : memref<32x128xf32, #tpu.memory_space<vmem>>, vector<1x32xf32>
    %72 = vector.extract_strided_slice %70 {offsets = [0, 0, 0], sizes = [1, 16, 32], strides = [1, 1, 1]} : vector<4x16x32xf32> to vector<1x16x32xf32>
    %73 = vector.shape_cast %72 : vector<1x16x32xf32> to vector<16x32xf32>
    %74 = vector.broadcast %71 : vector<1x32xf32> to vector<16x32xf32>
    %75 = arith.addf %74, %73 : vector<16x32xf32>
    %76 = vector.extract_strided_slice %70 {offsets = [1, 0, 0], sizes = [1, 16, 32], strides = [1, 1, 1]} : vector<4x16x32xf32> to vector<1x16x32xf32>
    %77 = vector.shape_cast %76 : vector<1x16x32xf32> to vector<16x32xf32>
    %78 = arith.addf %75, %77 : vector<16x32xf32>
    %79 = vector.extract_strided_slice %70 {offsets = [2, 0, 0], sizes = [1, 16, 32], strides = [1, 1, 1]} : vector<4x16x32xf32> to vector<1x16x32xf32>
    %80 = vector.shape_cast %79 : vector<1x16x32xf32> to vector<16x32xf32>
    %81 = arith.addf %78, %80 : vector<16x32xf32>
    %82 = vector.extract_strided_slice %70 {offsets = [3, 0, 0], sizes = [1, 16, 32], strides = [1, 1, 1]} : vector<4x16x32xf32> to vector<1x16x32xf32>
    %83 = vector.shape_cast %82 : vector<1x16x32xf32> to vector<16x32xf32>
    %84 = arith.addf %81, %83 : vector<16x32xf32>
    %85 = arith.addf %84, %1 : vector<16x32xf32>
    %cst_18 = arith.constant dense<0.000000e+00> : vector<16xf32>
    %86 = vector.multi_reduction <add>, %85, %cst_18 [1] : vector<16x32xf32> to vector<16xf32>
    %87 = vector.shape_cast %86 : vector<16xf32> to vector<16x1xf32>
    %cst_19 = arith.constant 3.200000e+01 : f32
    %88 = vector.broadcast %cst_19 : f32 to vector<16x1xf32>
    %89 = arith.divf %87, %88 : vector<16x1xf32>
    %90 = arith.mulf %85, %85 : vector<16x32xf32>
    %cst_20 = arith.constant dense<0.000000e+00> : vector<16xf32>
    %91 = vector.multi_reduction <add>, %90, %cst_20 [1] : vector<16x32xf32> to vector<16xf32>
    %92 = vector.shape_cast %91 : vector<16xf32> to vector<16x1xf32>
    %cst_21 = arith.constant 3.200000e+01 : f32
    %93 = vector.broadcast %cst_21 : f32 to vector<16x1xf32>
    %94 = arith.divf %92, %93 : vector<16x1xf32>
    %95 = arith.mulf %89, %89 : vector<16x1xf32>
    %96 = arith.subf %94, %95 : vector<16x1xf32>
    %cst_22 = arith.constant 0.000000e+00 : f32
    %97 = vector.broadcast %cst_22 : f32 to vector<16x1xf32>
    %98 = arith.maximumf %96, %97 : vector<16x1xf32>
    %99 = vector.broadcast %89 : vector<16x1xf32> to vector<16x32xf32>
    %100 = arith.subf %85, %99 : vector<16x32xf32>
    %cst_23 = arith.constant 9.99999997E-7 : f32
    %101 = vector.broadcast %cst_23 : f32 to vector<16x1xf32>
    %102 = arith.addf %98, %101 : vector<16x1xf32>
    %103 = math.rsqrt %102 : vector<16x1xf32>
    %104 = vector.broadcast %103 : vector<16x1xf32> to vector<16x32xf32>
    %105 = arith.mulf %100, %104 : vector<16x32xf32>
    %c6 = arith.constant 6 : index
    %c0_24 = arith.constant 0 : index
    %106 = vector.load %arg2[%c6, %c0_24] : memref<32x128xf32, #tpu.memory_space<vmem>>, vector<1x32xf32>
    %107 = vector.broadcast %106 : vector<1x32xf32> to vector<16x32xf32>
    %108 = arith.mulf %105, %107 : vector<16x32xf32>
    %c7 = arith.constant 7 : index
    %c0_25 = arith.constant 0 : index
    %109 = vector.load %arg2[%c7, %c0_25] : memref<32x128xf32, #tpu.memory_space<vmem>>, vector<1x32xf32>
    %110 = vector.broadcast %109 : vector<1x32xf32> to vector<16x32xf32>
    %111 = arith.addf %108, %110 : vector<16x32xf32>
    %112 = vector.extract_strided_slice %12 {offsets = [0, 0], sizes = [16, 8], strides = [1, 1]} : vector<16x64xf32> to vector<16x8xf32>
    %113 = vector.extract_strided_slice %12 {offsets = [0, 8], sizes = [16, 8], strides = [1, 1]} : vector<16x64xf32> to vector<16x8xf32>
    %114 = vector.extract_strided_slice %12 {offsets = [0, 16], sizes = [16, 8], strides = [1, 1]} : vector<16x64xf32> to vector<16x8xf32>
    %115 = vector.extract_strided_slice %12 {offsets = [0, 24], sizes = [16, 8], strides = [1, 1]} : vector<16x64xf32> to vector<16x8xf32>
    %116 = vector.shape_cast %112 : vector<16x8xf32> to vector<1x16x8xf32>
    %117 = vector.shape_cast %113 : vector<16x8xf32> to vector<1x16x8xf32>
    %118 = vector.shape_cast %114 : vector<16x8xf32> to vector<1x16x8xf32>
    %119 = vector.shape_cast %115 : vector<16x8xf32> to vector<1x16x8xf32>
    %120 = tpu.concatenate %116, %117, %118, %119 in 0 : vector<1x16x8xf32>, vector<1x16x8xf32>, vector<1x16x8xf32>, vector<1x16x8xf32> -> vector<4x16x8xf32>
    %121 = vector.extract_strided_slice %12 {offsets = [0, 32], sizes = [16, 8], strides = [1, 1]} : vector<16x64xf32> to vector<16x8xf32>
    %122 = vector.extract_strided_slice %12 {offsets = [0, 40], sizes = [16, 8], strides = [1, 1]} : vector<16x64xf32> to vector<16x8xf32>
    %123 = vector.extract_strided_slice %12 {offsets = [0, 48], sizes = [16, 8], strides = [1, 1]} : vector<16x64xf32> to vector<16x8xf32>
    %124 = vector.extract_strided_slice %12 {offsets = [0, 56], sizes = [16, 8], strides = [1, 1]} : vector<16x64xf32> to vector<16x8xf32>
    %125 = vector.shape_cast %121 : vector<16x8xf32> to vector<1x16x8xf32>
    %126 = vector.shape_cast %122 : vector<16x8xf32> to vector<1x16x8xf32>
    %127 = vector.shape_cast %123 : vector<16x8xf32> to vector<1x16x8xf32>
    %128 = vector.shape_cast %124 : vector<16x8xf32> to vector<1x16x8xf32>
    %129 = tpu.concatenate %125, %126, %127, %128 in 0 : vector<1x16x8xf32>, vector<1x16x8xf32>, vector<1x16x8xf32>, vector<1x16x8xf32> -> vector<4x16x8xf32>
    %130 = vector.extract_strided_slice %8 {offsets = [0, 96], sizes = [16, 8], strides = [1, 1]} : vector<16x128xf32> to vector<16x8xf32>
    %131 = vector.extract_strided_slice %8 {offsets = [0, 104], sizes = [16, 8], strides = [1, 1]} : vector<16x128xf32> to vector<16x8xf32>
    %132 = vector.extract_strided_slice %8 {offsets = [0, 112], sizes = [16, 8], strides = [1, 1]} : vector<16x128xf32> to vector<16x8xf32>
    %133 = vector.extract_strided_slice %8 {offsets = [0, 120], sizes = [16, 8], strides = [1, 1]} : vector<16x128xf32> to vector<16x8xf32>
    %134 = vector.shape_cast %130 : vector<16x8xf32> to vector<1x16x8xf32>
    %135 = vector.shape_cast %131 : vector<16x8xf32> to vector<1x16x8xf32>
    %136 = vector.shape_cast %132 : vector<16x8xf32> to vector<1x16x8xf32>
    %137 = vector.shape_cast %133 : vector<16x8xf32> to vector<1x16x8xf32>
    %138 = tpu.concatenate %134, %135, %136, %137 in 0 : vector<1x16x8xf32>, vector<1x16x8xf32>, vector<1x16x8xf32>, vector<1x16x8xf32> -> vector<4x16x8xf32>
    %139 = arith.truncf %120 : vector<4x16x8xf32> to vector<4x16x8xbf16>
    %140 = arith.truncf %129 : vector<4x16x8xf32> to vector<4x16x8xbf16>
    "tpu.trace_start"() <{level = 10 : i32, message = "hld,hmd->hlm"}> : () -> ()
    %cst_26 = arith.constant dense<0.000000e+00> : vector<4x16x16xf32>
    %141 = tpu.matmul %139, %140, %cst_26 {dimension_numbers = #tpu.dot_dimension_numbers<[2], [2], [1], [1], [0, 0, 0, 1, 1, 1], [0], [0]>} : vector<4x16x8xbf16>, vector<4x16x8xbf16>, vector<4x16x16xf32> -> vector<4x16x16xf32>
    "tpu.trace_stop"() : () -> ()
    %142 = vector.shape_cast %13 : vector<16x16xf32> to vector<1x16x16xf32>
    %143 = vector.broadcast %142 : vector<1x16x16xf32> to vector<4x16x16xf32>
    %144 = arith.addf %141, %143 : vector<4x16x16xf32>
    %cst_27 = arith.constant dense<0xFF800000> : vector<4x16xf32>
    %145 = vector.multi_reduction <maximumf>, %144, %cst_27 [2] : vector<4x16x16xf32> to vector<4x16xf32>
    %146 = vector.shape_cast %145 : vector<4x16xf32> to vector<4x16x1xf32>
    %147 = vector.broadcast %146 : vector<4x16x1xf32> to vector<4x16x16xf32>
    %148 = arith.subf %144, %147 : vector<4x16x16xf32>
    %149 = math.exp %148 : vector<4x16x16xf32>
    %cst_28 = arith.constant dense<0.000000e+00> : vector<4x16xf32>
    %150 = vector.multi_reduction <add>, %149, %cst_28 [2] : vector<4x16x16xf32> to vector<4x16xf32>
    %151 = vector.shape_cast %150 : vector<4x16xf32> to vector<4x16x1xf32>
    %152 = tpu.reciprocal %151 {approx = true} : vector<4x16x1xf32> -> vector<4x16x1xf32>
    %153 = vector.broadcast %152 : vector<4x16x1xf32> to vector<4x16x16xf32>
    %154 = arith.mulf %149, %153 : vector<4x16x16xf32>
    %155 = arith.truncf %154 : vector<4x16x16xf32> to vector<4x16x16xbf16>
    %156 = arith.truncf %138 : vector<4x16x8xf32> to vector<4x16x8xbf16>
    "tpu.trace_start"() <{level = 10 : i32, message = "hlm,hmd->hld"}> : () -> ()
    %cst_29 = arith.constant dense<0.000000e+00> : vector<4x16x8xf32>
    %157 = tpu.matmul %155, %156, %cst_29 {dimension_numbers = #tpu.dot_dimension_numbers<[2], [1], [1], [2], [0, 0, 0, 1, 1, 2], [0], [0]>} : vector<4x16x16xbf16>, vector<4x16x8xbf16>, vector<4x16x8xf32> -> vector<4x16x8xf32>
    "tpu.trace_stop"() : () -> ()
    %158 = arith.truncf %157 : vector<4x16x8xf32> to vector<4x16x8xbf16>
    %c0_30 = arith.constant 0 : index
    %c384 = arith.constant 384 : index
    %159 = vector.load %arg1[%c0_30, %c384] : memref<32x768xbf16, #tpu.memory_space<vmem>>, vector<8x32xbf16>
    %c8_31 = arith.constant 8 : index
    %c384_32 = arith.constant 384 : index
    %160 = vector.load %arg1[%c8_31, %c384_32] : memref<32x768xbf16, #tpu.memory_space<vmem>>, vector<8x32xbf16>
    %c16_33 = arith.constant 16 : index
    %c384_34 = arith.constant 384 : index
    %161 = vector.load %arg1[%c16_33, %c384_34] : memref<32x768xbf16, #tpu.memory_space<vmem>>, vector<8x32xbf16>
    %c24_35 = arith.constant 24 : index
    %c384_36 = arith.constant 384 : index
    %162 = vector.load %arg1[%c24_35, %c384_36] : memref<32x768xbf16, #tpu.memory_space<vmem>>, vector<8x32xbf16>
    %163 = vector.shape_cast %159 : vector<8x32xbf16> to vector<1x8x32xbf16>
    %164 = vector.shape_cast %160 : vector<8x32xbf16> to vector<1x8x32xbf16>
    %165 = vector.shape_cast %161 : vector<8x32xbf16> to vector<1x8x32xbf16>
    %166 = vector.shape_cast %162 : vector<8x32xbf16> to vector<1x8x32xbf16>
    %167 = tpu.concatenate %163, %164, %165, %166 in 0 : vector<1x8x32xbf16>, vector<1x8x32xbf16>, vector<1x8x32xbf16>, vector<1x8x32xbf16> -> vector<4x8x32xbf16>
    "tpu.trace_start"() <{level = 10 : i32, message = "hld,hde->hle"}> : () -> ()
    %cst_37 = arith.constant dense<0.000000e+00> : vector<4x16x32xf32>
    %168 = tpu.matmul %158, %167, %cst_37 {dimension_numbers = #tpu.dot_dimension_numbers<[2], [1], [1], [2], [0, 0, 0, 1, 1, 2], [0], [0]>} : vector<4x16x8xbf16>, vector<4x8x32xbf16>, vector<4x16x32xf32> -> vector<4x16x32xf32>
    "tpu.trace_stop"() : () -> ()
    %c3 = arith.constant 3 : index
    %c0_38 = arith.constant 0 : index
    %169 = vector.load %arg2[%c3, %c0_38] : memref<32x128xf32, #tpu.memory_space<vmem>>, vector<1x32xf32>
    %170 = vector.extract_strided_slice %168 {offsets = [0, 0, 0], sizes = [1, 16, 32], strides = [1, 1, 1]} : vector<4x16x32xf32> to vector<1x16x32xf32>
    %171 = vector.shape_cast %170 : vector<1x16x32xf32> to vector<16x32xf32>
    %172 = vector.broadcast %169 : vector<1x32xf32> to vector<16x32xf32>
    %173 = arith.addf %172, %171 : vector<16x32xf32>
    %174 = vector.extract_strided_slice %168 {offsets = [1, 0, 0], sizes = [1, 16, 32], strides = [1, 1, 1]} : vector<4x16x32xf32> to vector<1x16x32xf32>
    %175 = vector.shape_cast %174 : vector<1x16x32xf32> to vector<16x32xf32>
    %176 = arith.addf %173, %175 : vector<16x32xf32>
    %177 = vector.extract_strided_slice %168 {offsets = [2, 0, 0], sizes = [1, 16, 32], strides = [1, 1, 1]} : vector<4x16x32xf32> to vector<1x16x32xf32>
    %178 = vector.shape_cast %177 : vector<1x16x32xf32> to vector<16x32xf32>
    %179 = arith.addf %176, %178 : vector<16x32xf32>
    %180 = vector.extract_strided_slice %168 {offsets = [3, 0, 0], sizes = [1, 16, 32], strides = [1, 1, 1]} : vector<4x16x32xf32> to vector<1x16x32xf32>
    %181 = vector.shape_cast %180 : vector<1x16x32xf32> to vector<16x32xf32>
    %182 = arith.addf %179, %181 : vector<16x32xf32>
    %183 = arith.addf %182, %111 : vector<16x32xf32>
    %cst_39 = arith.constant dense<0.000000e+00> : vector<16xf32>
    %184 = vector.multi_reduction <add>, %183, %cst_39 [1] : vector<16x32xf32> to vector<16xf32>
    %185 = vector.shape_cast %184 : vector<16xf32> to vector<16x1xf32>
    %cst_40 = arith.constant 3.200000e+01 : f32
    %186 = vector.broadcast %cst_40 : f32 to vector<16x1xf32>
    %187 = arith.divf %185, %186 : vector<16x1xf32>
    %188 = arith.mulf %183, %183 : vector<16x32xf32>
    %cst_41 = arith.constant dense<0.000000e+00> : vector<16xf32>
    %189 = vector.multi_reduction <add>, %188, %cst_41 [1] : vector<16x32xf32> to vector<16xf32>
    %190 = vector.shape_cast %189 : vector<16xf32> to vector<16x1xf32>
    %cst_42 = arith.constant 3.200000e+01 : f32
    %191 = vector.broadcast %cst_42 : f32 to vector<16x1xf32>
    %192 = arith.divf %190, %191 : vector<16x1xf32>
    %193 = arith.mulf %187, %187 : vector<16x1xf32>
    %194 = arith.subf %192, %193 : vector<16x1xf32>
    %cst_43 = arith.constant 0.000000e+00 : f32
    %195 = vector.broadcast %cst_43 : f32 to vector<16x1xf32>
    %196 = arith.maximumf %194, %195 : vector<16x1xf32>
    %197 = vector.broadcast %187 : vector<16x1xf32> to vector<16x32xf32>
    %198 = arith.subf %183, %197 : vector<16x32xf32>
    %cst_44 = arith.constant 9.99999997E-7 : f32
    %199 = vector.broadcast %cst_44 : f32 to vector<16x1xf32>
    %200 = arith.addf %196, %199 : vector<16x1xf32>
    %201 = math.rsqrt %200 : vector<16x1xf32>
    %202 = vector.broadcast %201 : vector<16x1xf32> to vector<16x32xf32>
    %203 = arith.mulf %198, %202 : vector<16x32xf32>
    %c8_45 = arith.constant 8 : index
    %c0_46 = arith.constant 0 : index
    %204 = vector.load %arg2[%c8_45, %c0_46] : memref<32x128xf32, #tpu.memory_space<vmem>>, vector<1x32xf32>
    %205 = vector.broadcast %204 : vector<1x32xf32> to vector<16x32xf32>
    %206 = arith.mulf %203, %205 : vector<16x32xf32>
    %c9 = arith.constant 9 : index
    %c0_47 = arith.constant 0 : index
    %207 = vector.load %arg2[%c9, %c0_47] : memref<32x128xf32, #tpu.memory_space<vmem>>, vector<1x32xf32>
    %208 = vector.broadcast %207 : vector<1x32xf32> to vector<16x32xf32>
    %209 = arith.addf %206, %208 : vector<16x32xf32>
    %210 = arith.truncf %209 : vector<16x32xf32> to vector<16x32xbf16>
    %c0_48 = arith.constant 0 : index
    %c512 = arith.constant 512 : index
    %211 = vector.load %arg1[%c0_48, %c512] : memref<32x768xbf16, #tpu.memory_space<vmem>>, vector<32x32xbf16>
    %cst_49 = arith.constant dense<0.000000e+00> : vector<16x32xf32>
    %212 = tpu.matmul %210, %211, %cst_49 {dimension_numbers = #tpu.dot_dimension_numbers<[1], [0], [0], [1], [0, 0, 1, 1], [], []>} : vector<16x32xbf16>, vector<32x32xbf16>, vector<16x32xf32> -> vector<16x32xf32>
    %c4 = arith.constant 4 : index
    %c0_50 = arith.constant 0 : index
    %213 = vector.load %arg2[%c4, %c0_50] : memref<32x128xf32, #tpu.memory_space<vmem>>, vector<1x32xf32>
    %214 = vector.broadcast %213 : vector<1x32xf32> to vector<16x32xf32>
    %215 = arith.addf %212, %214 : vector<16x32xf32>
    %cst_51 = arith.constant 0.000000e+00 : f32
    %216 = vector.broadcast %cst_51 : f32 to vector<16x32xf32>
    %217 = arith.maximumf %215, %216 : vector<16x32xf32>
    %218 = arith.truncf %217 : vector<16x32xf32> to vector<16x32xbf16>
    %c0_52 = arith.constant 0 : index
    %c640 = arith.constant 640 : index
    %219 = vector.load %arg1[%c0_52, %c640] : memref<32x768xbf16, #tpu.memory_space<vmem>>, vector<32x32xbf16>
    %cst_53 = arith.constant dense<0.000000e+00> : vector<16x32xf32>
    %220 = tpu.matmul %218, %219, %cst_53 {dimension_numbers = #tpu.dot_dimension_numbers<[1], [0], [0], [1], [0, 0, 1, 1], [], []>} : vector<16x32xbf16>, vector<32x32xbf16>, vector<16x32xf32> -> vector<16x32xf32>
    %c5 = arith.constant 5 : index
    %c0_54 = arith.constant 0 : index
    %221 = vector.load %arg2[%c5, %c0_54] : memref<32x128xf32, #tpu.memory_space<vmem>>, vector<1x32xf32>
    %222 = vector.broadcast %221 : vector<1x32xf32> to vector<16x32xf32>
    %223 = arith.addf %220, %222 : vector<16x32xf32>
    %224 = arith.addf %223, %209 : vector<16x32xf32>
    %cst_55 = arith.constant dense<0.000000e+00> : vector<16xf32>
    %225 = vector.multi_reduction <add>, %224, %cst_55 [1] : vector<16x32xf32> to vector<16xf32>
    %226 = vector.shape_cast %225 : vector<16xf32> to vector<16x1xf32>
    %cst_56 = arith.constant 3.200000e+01 : f32
    %227 = vector.broadcast %cst_56 : f32 to vector<16x1xf32>
    %228 = arith.divf %226, %227 : vector<16x1xf32>
    %229 = arith.mulf %224, %224 : vector<16x32xf32>
    %cst_57 = arith.constant dense<0.000000e+00> : vector<16xf32>
    %230 = vector.multi_reduction <add>, %229, %cst_57 [1] : vector<16x32xf32> to vector<16xf32>
    %231 = vector.shape_cast %230 : vector<16xf32> to vector<16x1xf32>
    %cst_58 = arith.constant 3.200000e+01 : f32
    %232 = vector.broadcast %cst_58 : f32 to vector<16x1xf32>
    %233 = arith.divf %231, %232 : vector<16x1xf32>
    %234 = arith.mulf %228, %228 : vector<16x1xf32>
    %235 = arith.subf %233, %234 : vector<16x1xf32>
    %cst_59 = arith.constant 0.000000e+00 : f32
    %236 = vector.broadcast %cst_59 : f32 to vector<16x1xf32>
    %237 = arith.maximumf %235, %236 : vector<16x1xf32>
    %238 = vector.broadcast %228 : vector<16x1xf32> to vector<16x32xf32>
    %239 = arith.subf %224, %238 : vector<16x32xf32>
    %cst_60 = arith.constant 9.99999997E-7 : f32
    %240 = vector.broadcast %cst_60 : f32 to vector<16x1xf32>
    %241 = arith.addf %237, %240 : vector<16x1xf32>
    %242 = math.rsqrt %241 : vector<16x1xf32>
    %243 = vector.broadcast %242 : vector<16x1xf32> to vector<16x32xf32>
    %244 = arith.mulf %239, %243 : vector<16x32xf32>
    %c10 = arith.constant 10 : index
    %c0_61 = arith.constant 0 : index
    %245 = vector.load %arg2[%c10, %c0_61] : memref<32x128xf32, #tpu.memory_space<vmem>>, vector<1x32xf32>
    %246 = vector.broadcast %245 : vector<1x32xf32> to vector<16x32xf32>
    %247 = arith.mulf %244, %246 : vector<16x32xf32>
    %c11 = arith.constant 11 : index
    %c0_62 = arith.constant 0 : index
    %248 = vector.load %arg2[%c11, %c0_62] : memref<32x128xf32, #tpu.memory_space<vmem>>, vector<1x32xf32>
    %249 = vector.broadcast %248 : vector<1x32xf32> to vector<16x32xf32>
    %250 = arith.addf %247, %249 : vector<16x32xf32>
    %c0_63 = arith.constant 0 : index
    %c0_64 = arith.constant 0 : index
    %251 = vector.load %arg3[%c0_63, %c0_64] : memref<16x32xf32, #tpu.memory_space<vmem>>, vector<16x32xf32>
    tpu.vector_store %arg3[%c0_63, %c0_64], %250 {strides = array<i32>} : memref<16x32xf32, #tpu.memory_space<vmem>>, vector<16x32xf32>,
    return
  }
}

</mosaic_0001>

<llo_original>
// kernel: _lambda_.1
$region0: #{_lambda_.1}
  #allocation0 [shape = 'u32[]', space=smem, size = 0x4, offset = 0x4, fixed_abs, tag = 'smem constant byte address 0x4 - core index']
  #allocation1 [shape = 'u32[72,128]{1,0:T(1,128)}', space=vmem, size = 0x9000, scoped, tag = 'internal scratch']
  %s0 = inlined_call_operand.vmem [shape: f32[32,32], index: 0, kind: input, shape index: {}]
  %s1 = inlined_call_operand.hbm [shape: bf16[32,768], index: 1, kind: input, shape index: {}]
  %s2 = inlined_call_operand.vmem [shape: f32[32,128], index: 2, kind: input, shape index: {}]
  %s3 = inlined_call_operand.hbm [shape: f32[16,32], index: 3, kind: output, shape index: {}]
  %s4 = sld [smem:[#allocation0]]
  $region26: #{_lambda_.1} parent=0
    _
  %s6 = ssub.s32 1, %s4
  %s7 = scalar_select 0, %s6, %s4
  $region1: #{_lambda_.1} parent=0
    #allocation2 [shape = 'u8[49152]{0}', space=vmem, size = 0xc000, scoped, tag = 'input window, operand 1, single buffered']
    #allocation3 [shape = 's32[1]{0}', space=sflag, size = 0x4, scoped, tag = 'scoped memory for _lambda_.1']
    #allocation4 [shape = 's32[1]{0}', space=sflag, size = 0x4, scoped, tag = 'scoped memory for _lambda_.1']
    #allocation5 [shape = 'u8[8192]{0}', space=vmem, size = 0x2000, scoped, tag = 'output window, operand 0, single buffered']
    %8 = vsyncpa [#allocation3], 0
    %9 = vsyncpa [#allocation4], 0
    // Predicated region
    $region2: #{_lambda_.1} parent=1 // pred_check
      _
    $region3: #{_lambda_.1} parent=1 // pred_check_branch
      %11 = sbr.rel (0) target = $region5
    $region4: #{_lambda_.1} parent=1 // pred_region
      _
    $region5: #{_lambda_.1} parent=1 // pred_fallthru
      _
    // Predicated region
    $region6: #{_lambda_.1} parent=1 // pred_check
      _
    $region7: #{_lambda_.1} parent=1 // pred_check_branch
      %13 = sbr.rel (0) target = $region9
    $region8: #{_lambda_.1} parent=1 // pred_region
      %15 = vsyncadd [#allocation3], 0
      %s16 = sshll.u32 %s1, 4
      %s17 = int_to_ptr.hbm [resolvable:$true] %s16
      %s18 = sshll.u32 [#allocation2], 4
      %s19 = int_to_ptr.vmem [resolvable:$true] %s18
      %24 = dma.hbm_to_vmem [thread:$0]  %s17, 1536, %s19, [#allocation3], 384, 384, 24
    $region9: #{_lambda_.1} parent=1 // pred_fallthru
      _
    // Predicated region
    $region10: #{_lambda_.1} parent=1 // pred_check
      _
    $region11: #{_lambda_.1} parent=1 // pred_check_branch
      %26 = sbr.rel (0) target = $region13
    $region12: #{_lambda_.1} parent=1 // pred_region
      _
    $region13: #{_lambda_.1} parent=1 // pred_fallthru
      _
    // Predicated region
    $region14: #{_lambda_.1} parent=1 // pred_check
      _
    $region15: #{_lambda_.1} parent=1 // pred_check_branch
      %28 = sbr.rel (0) target = $region17
    $region16: #{_lambda_.1} parent=1 // pred_region
      %30 = dma.done [#allocation3], 1536
    $region17: #{_lambda_.1} parent=1 // pred_fallthru
      _
    %v32 = vld [vmem:[%s0] sm:$0xff]
    %v33 = vld [vmem:[%s0 + $0x8] sm:$0xff]
    %v34 = vld [vmem:[%s0 + $0x10] sm:$0xff]
    %v35 = vld [vmem:[%s0 + $0x18] sm:$0xff]
    %v36 = vpack.c.bf16 %v33, %v32
    %v37 = vpack.c.bf16 %v35, %v34
    %v38 = vld [vmem:[#allocation2] sm:$0xff]
    %v39 = vld [vmem:[#allocation2 + $0x18] sm:$0xff]
    %v40 = vld [vmem:[#allocation2 + $0x30] sm:$0xff]
    %v41 = vld [vmem:[#allocation2 + $0x48] sm:$0xff]
    %v46 = vunpack.c.l.b16 %v38
    %v47 = vunpack.c.h.b16 %v38
    %v48 = vunpack.c.l.b16 %v39
    %v49 = vunpack.c.h.b16 %v39
    %v50 = vunpack.c.l.b16 %v40
    %v51 = vunpack.c.h.b16 %v40
    %v52 = vunpack.c.l.b16 %v41
    %v53 = vunpack.c.h.b16 %v41
    %v54 = vpack.c.b16 %v48, %v46
    %v55 = vpack.c.b16 %v49, %v47
    %v56 = vpack.c.b16 %v52, %v50
    %v57 = vpack.c.b16 %v53, %v51
    %vm62 = vcmask 261120
    %v64 = vsel %vm62, %v36, 0
    %v67 = vsel %vm62, %v37, 0
    %69 = vmatpush.bf16.msra.mxu0 0
    %70 = vmatpush.bf16.msra.mxu0 0
    %71 = vmatpush.bf16.msra.mxu0 0
    %72 = vmatpush.bf16.msra.mxu0 0
    %73 = vmatpush.bf16.msra.mxu0 0
    %74 = vmatpush.bf16.msra.mxu0 0
    %75 = vmatpush.bf16.msra.mxu0 %v56
    %76 = vmatpush.bf16.msra.mxu0 %v54
    %77 = vmatmul.bf16.gmra.mxu0 %v64
    %v78 = vpop.f32.mrf.mxu0
    %v79 = vadd.f32 0.0, %v78
    %v80 = vpop.f32.mrf.mxu0
    %v81 = vadd.f32 0.0, %v80
    %82 = vmatmul.bf16.gmra.mxu0 %v67
    %v83 = vpop.f32.mrf.mxu0
    %v84 = vpop.f32.mrf.mxu0
    %85 = vdwg.mxu0
    %86 = vmatpush.bf16.msra.mxu0 0
    %87 = vmatpush.bf16.msra.mxu0 0
    %88 = vmatpush.bf16.msra.mxu0 0
    %89 = vmatpush.bf16.msra.mxu0 0
    %90 = vmatpush.bf16.msra.mxu0 0
    %91 = vmatpush.bf16.msra.mxu0 0
    %92 = vmatpush.bf16.msra.mxu0 %v57
    %93 = vmatpush.bf16.msra.mxu0 %v55
    %94 = vmatmul.bf16.gmra.mxu0 %v64
    %v95 = vpop.f32.mrf.mxu0
    %v96 = vpop.f32.mrf.mxu0
    %97 = vmatmul.bf16.gmra.mxu0 %v67
    %v98 = vpop.f32.mrf.mxu0
    %v99 = vadd.f32 0.0, %v98
    %v100 = vpop.f32.mrf.mxu0
    %v101 = vadd.f32 0.0, %v100
    %102 = vdwg.mxu0
    %v103 = vld [vmem:[%s2] sm:$0x1]
    %v104 = vperm.slane %v103, 0
    %v105 = vadd.f32 %v79, %v104
    %v106 = vadd.f32 %v81, %v104
    %v107 = vld [vmem:[%s2 + $0x1] sm:$0x1]
    %v108 = vperm.slane %v107, 0
    %v109 = vadd.f32 %v99, %v108
    %v110 = vadd.f32 %v101, %v108
    %v111 = vld [vmem:[%s2 + $0x10] sm:$0xff]
    %v112 = vld [vmem:[%s2 + $0x18] sm:$0xff]
    %115 = vrot.lane.b32.xlu0 %v105, 120
    %v116 = vpop.permute.xlu0 %115
    %117 = vrot.lane.b32.xlu0 %v106, 120
    %v118 = vpop.permute.xlu0 %117
    %121 = vrot.lane.b32.xlu0 %v105, 112
    %v122 = vpop.permute.xlu0 %121
    %123 = vrot.lane.b32.xlu0 %v106, 112
    %v124 = vpop.permute.xlu0 %123
    %127 = vrot.lane.b32.xlu0 %v105, 104
    %v128 = vpop.permute.xlu0 %127
    %129 = vrot.lane.b32.xlu0 %v106, 104
    %v130 = vpop.permute.xlu0 %129
    %v133 = vpack.c.bf16 %v105, %v105
    %v134 = vpack.c.bf16 %v106, %v106
    %v135 = vpack.c.bf16 %v116, %v116
    %v136 = vpack.c.bf16 %v118, %v118
    %v137 = vpack.c.bf16 %v122, %v122
    %v138 = vpack.c.bf16 %v124, %v124
    %v139 = vpack.c.bf16 %v128, %v128
    %v140 = vpack.c.bf16 %v130, %v130
    %v143 = vunpack.c.l.b16 %v133
    %v144 = vunpack.c.l.b16 %v134
    %v145 = vpack.c.b16 %v144, %v143
    %146 = vrot.lane.b32.xlu0 %v145, 96
    %v147 = vpop.permute.xlu0 %146
    %vm148 = vcmask 64512
    %v150 = vsel %vm148, %v145, 0
    %v153 = vsel %vm148, %v147, 0
    %155 = vmatpush.bf16.xpose.msra.mxu0 0
    %156 = vmatpush.bf16.xpose.msra.mxu0 0
    %157 = vmatpush.bf16.xpose.msra.mxu0 0
    %158 = vmatpush.bf16.xpose.msra.mxu0 0
    %159 = vmatpush.bf16.xpose.msra.mxu0 0
    %160 = vmatpush.bf16.xpose.msra.mxu0 0
    %161 = vmatpush.bf16.xpose.msra.mxu0 0
    %162 = vmatpush.bf16.xpose.msra.mxu0 %v153
    %163 = vmatmul.bf16.gmra.mxu0 %v150
    %v164 = vpop.f32.mrf.mxu0
    %v165 = vadd.f32 %v111, %v164
    %v166 = vpop.f32.mrf.mxu0
    %v167 = vadd.f32 %v112, %v166
    %168 = vdwg.mxu0
    %v171 = vunpack.c.l.b16 %v135
    %v172 = vunpack.c.l.b16 %v136
    %v173 = vpack.c.b16 %v172, %v171
    %174 = vrot.lane.b32.xlu0 %v173, 96
    %v175 = vpop.permute.xlu0 %174
    %v177 = vsel %vm148, %v173, 0
    %v180 = vsel %vm148, %v175, 0
    %182 = vmatpush.bf16.xpose.msra.mxu0 0
    %183 = vmatpush.bf16.xpose.msra.mxu0 0
    %184 = vmatpush.bf16.xpose.msra.mxu0 0
    %185 = vmatpush.bf16.xpose.msra.mxu0 0
    %186 = vmatpush.bf16.xpose.msra.mxu0 0
    %187 = vmatpush.bf16.xpose.msra.mxu0 0
    %188 = vmatpush.bf16.xpose.msra.mxu0 0
    %189 = vmatpush.bf16.xpose.msra.mxu0 %v180
    %190 = vmatmul.bf16.gmra.mxu0 %v177
    %v191 = vpop.f32.mrf.mxu0
    %v192 = vadd.f32 %v111, %v191
    %v193 = vpop.f32.mrf.mxu0
    %v194 = vadd.f32 %v112, %v193
    %195 = vdwg.mxu0
    %v198 = vunpack.c.l.b16 %v137
    %v199 = vunpack.c.l.b16 %v138
    %v200 = vpack.c.b16 %v199, %v198
    %201 = vrot.lane.b32.xlu0 %v200, 96
    %v202 = vpop.permute.xlu0 %201
    %v204 = vsel %vm148, %v200, 0
    %v207 = vsel %vm148, %v202, 0
    %209 = vmatpush.bf16.xpose.msra.mxu0 0
    %210 = vmatpush.bf16.xpose.msra.mxu0 0
    %211 = vmatpush.bf16.xpose.msra.mxu0 0
    %212 = vmatpush.bf16.xpose.msra.mxu0 0
    %213 = vmatpush.bf16.xpose.msra.mxu0 0
    %214 = vmatpush.bf16.xpose.msra.mxu0 0
    %215 = vmatpush.bf16.xpose.msra.mxu0 0
    %216 = vmatpush.bf16.xpose.msra.mxu0 %v207
    %217 = vmatmul.bf16.gmra.mxu0 %v204
    %v218 = vpop.f32.mrf.mxu0
    %v219 = vadd.f32 %v111, %v218
    %v220 = vpop.f32.mrf.mxu0
    %v221 = vadd.f32 %v112, %v220
    %222 = vdwg.mxu0
    %v225 = vunpack.c.l.b16 %v139
    %v226 = vunpack.c.l.b16 %v140
    %v227 = vpack.c.b16 %v226, %v225
    %228 = vrot.lane.b32.xlu0 %v227, 96
    %v229 = vpop.permute.xlu0 %228
    %v231 = vsel %vm148, %v227, 0
    %v234 = vsel %vm148, %v229, 0
    %236 = vmatpush.bf16.xpose.msra.mxu0 0
    %237 = vmatpush.bf16.xpose.msra.mxu0 0
    %238 = vmatpush.bf16.xpose.msra.mxu0 0
    %239 = vmatpush.bf16.xpose.msra.mxu0 0
    %240 = vmatpush.bf16.xpose.msra.mxu0 0
    %241 = vmatpush.bf16.xpose.msra.mxu0 0
    %242 = vmatpush.bf16.xpose.msra.mxu0 0
    %243 = vmatpush.bf16.xpose.msra.mxu0 %v234
    %244 = vmatmul.bf16.gmra.mxu0 %v231
    %v245 = vpop.f32.mrf.mxu0
    %v246 = vadd.f32 %v111, %v245
    %v247 = vpop.f32.mrf.mxu0
    %v248 = vadd.f32 %v112, %v247
    %249 = vdwg.mxu0
    %vm250 = vcmask 130048
    %v251 = vsel %vm250, %v165, -inf
    %252 = vmax.xlane.f32.xlu0 %v251
    %v253 = vpop.xlane.xlu0 %252
    %v254 = vsel %vm250, %v167, -inf
    %255 = vmax.xlane.f32.xlu0 %v254
    %v256 = vpop.xlane.xlu0 %255
    %v257 = vsel %vm250, %v192, -inf
    %258 = vmax.xlane.f32.xlu0 %v257
    %v259 = vpop.xlane.xlu0 %258
    %v260 = vsel %vm250, %v194, -inf
    %261 = vmax.xlane.f32.xlu0 %v260
    %v262 = vpop.xlane.xlu0 %261
    %v263 = vsel %vm250, %v219, -inf
    %264 = vmax.xlane.f32.xlu0 %v263
    %v265 = vpop.xlane.xlu0 %264
    %v266 = vsel %vm250, %v221, -inf
    %267 = vmax.xlane.f32.xlu0 %v266
    %v268 = vpop.xlane.xlu0 %267
    %v269 = vsel %vm250, %v246, -inf
    %270 = vmax.xlane.f32.xlu0 %v269
    %v271 = vpop.xlane.xlu0 %270
    %v272 = vsel %vm250, %v248, -inf
    %273 = vmax.xlane.f32.xlu0 %v272
    %v274 = vpop.xlane.xlu0 %273
    %v275 = vsub.f32 %v165, %v253
    %v276 = vsub.f32 %v167, %v256
    %v277 = vsub.f32 %v192, %v259
    %v278 = vsub.f32 %v194, %v262
    %v279 = vsub.f32 %v219, %v265
    %v280 = vsub.f32 %v221, %v268
    %v281 = vsub.f32 %v246, %v271
    %v282 = vsub.f32 %v248, %v274
    %v283 = vmul.f32 %v275, 1.442695
    %v284 = vpow.pop %v283
    %v285 = vmul.f32 %v276, 1.442695
    %v286 = vpow.pop %v285
    %v287 = vmul.f32 %v277, 1.442695
    %v288 = vpow.pop %v287
    %v289 = vmul.f32 %v278, 1.442695
    %v290 = vpow.pop %v289
    %v291 = vmul.f32 %v279, 1.442695
    %v292 = vpow.pop %v291
    %v293 = vmul.f32 %v280, 1.442695
    %v294 = vpow.pop %v293
    %v295 = vmul.f32 %v281, 1.442695
    %v296 = vpow.pop %v295
    %v297 = vmul.f32 %v282, 1.442695
    %v298 = vpow.pop %v297
    %v299 = vsel %vm250, %v284, 0.0
    %300 = vadd.xlane.f32.xlu0 %v299
    %v301 = vpop.xlane.xlu0 %300
    %v302 = vsel %vm250, %v286, 0.0
    %303 = vadd.xlane.f32.xlu0 %v302
    %v304 = vpop.xlane.xlu0 %303
    %v305 = vsel %vm250, %v288, 0.0
    %306 = vadd.xlane.f32.xlu0 %v305
    %v307 = vpop.xlane.xlu0 %306
    %v308 = vsel %vm250, %v290, 0.0
    %309 = vadd.xlane.f32.xlu0 %v308
    %v310 = vpop.xlane.xlu0 %309
    %v311 = vsel %vm250, %v292, 0.0
    %312 = vadd.xlane.f32.xlu0 %v311
    %v313 = vpop.xlane.xlu0 %312
    %v314 = vsel %vm250, %v294, 0.0
    %315 = vadd.xlane.f32.xlu0 %v314
    %v316 = vpop.xlane.xlu0 %315
    %v317 = vsel %vm250, %v296, 0.0
    %318 = vadd.xlane.f32.xlu0 %v317
    %v319 = vpop.xlane.xlu0 %318
    %v320 = vsel %vm250, %v298, 0.0
    %321 = vadd.xlane.f32.xlu0 %v320
    %v322 = vpop.xlane.xlu0 %321
    %v323 = vrcp.pop %v301
    %v324 = vrcp.pop %v304
    %v325 = vrcp.pop %v307
    %v326 = vrcp.pop %v310
    %v327 = vrcp.pop %v313
    %v328 = vrcp.pop %v316
    %v329 = vrcp.pop %v319
    %v330 = vrcp.pop %v322
    %v331 = vmul.f32 %v284, %v323
    %v332 = vmul.f32 %v286, %v324
    %v333 = vmul.f32 %v288, %v325
    %v334 = vmul.f32 %v290, %v326
    %v335 = vmul.f32 %v292, %v327
    %v336 = vmul.f32 %v294, %v328
    %v337 = vmul.f32 %v296, %v329
    %v338 = vmul.f32 %v298, %v330
    %v339 = vpack.c.bf16 %v331, %v331
    %v340 = vpack.c.bf16 %v332, %v332
    %v341 = vpack.c.bf16 %v333, %v333
    %v342 = vpack.c.bf16 %v334, %v334
    %v343 = vpack.c.bf16 %v335, %v335
    %v344 = vpack.c.bf16 %v336, %v336
    %v345 = vpack.c.bf16 %v337, %v337
    %v346 = vpack.c.bf16 %v338, %v338
    %v349 = vunpack.c.l.b16 %v339
    %v350 = vunpack.c.l.b16 %v340
    %v351 = vpack.c.b16 %v350, %v349
    %352 = vrot.lane.b32.xlu0 %v145, 64
    %v353 = vpop.permute.xlu0 %352
    %v356 = vsel %vm250, %v351, 0
    %358 = vmatpush.bf16.msra.mxu0 0
    %359 = vmatpush.bf16.msra.mxu0 0
    %360 = vmatpush.bf16.msra.mxu0 0
    %361 = vmatpush.bf16.msra.mxu0 0
    %362 = vmatpush.bf16.msra.mxu0 0
    %363 = vmatpush.bf16.msra.mxu0 0
    %364 = vmatpush.bf16.msra.mxu0 0
    %365 = vmatpush.bf16.msra.mxu0 %v353
    %366 = vmatmul.bf16.gmra.mxu0 %v356
    %v367 = vpop.f32.mrf.mxu0
    %v368 = vadd.f32 0.0, %v367
    %v369 = vpop.f32.mrf.mxu0
    %v370 = vadd.f32 0.0, %v369
    %371 = vdwg.mxu0
    %v374 = vunpack.c.l.b16 %v341
    %v375 = vunpack.c.l.b16 %v342
    %v376 = vpack.c.b16 %v375, %v374
    %377 = vrot.lane.b32.xlu0 %v173, 64
    %v378 = vpop.permute.xlu0 %377
    %v381 = vsel %vm250, %v376, 0
    %383 = vmatpush.bf16.msra.mxu0 0
    %384 = vmatpush.bf16.msra.mxu0 0
    %385 = vmatpush.bf16.msra.mxu0 0
    %386 = vmatpush.bf16.msra.mxu0 0
    %387 = vmatpush.bf16.msra.mxu0 0
    %388 = vmatpush.bf16.msra.mxu0 0
    %389 = vmatpush.bf16.msra.mxu0 0
    %390 = vmatpush.bf16.msra.mxu0 %v378
    %391 = vmatmul.bf16.gmra.mxu0 %v381
    %v392 = vpop.f32.mrf.mxu0
    %v393 = vadd.f32 0.0, %v392
    %v394 = vpop.f32.mrf.mxu0
    %v395 = vadd.f32 0.0, %v394
    %396 = vdwg.mxu0
    %v399 = vunpack.c.l.b16 %v343
    %v400 = vunpack.c.l.b16 %v344
    %v401 = vpack.c.b16 %v400, %v399
    %402 = vrot.lane.b32.xlu0 %v200, 64
    %v403 = vpop.permute.xlu0 %402
    %v406 = vsel %vm250, %v401, 0
    %408 = vmatpush.bf16.msra.mxu0 0
    %409 = vmatpush.bf16.msra.mxu0 0
    %410 = vmatpush.bf16.msra.mxu0 0
    %411 = vmatpush.bf16.msra.mxu0 0
    %412 = vmatpush.bf16.msra.mxu0 0
    %413 = vmatpush.bf16.msra.mxu0 0
    %414 = vmatpush.bf16.msra.mxu0 0
    %415 = vmatpush.bf16.msra.mxu0 %v403
    %416 = vmatmul.bf16.gmra.mxu0 %v406
    %v417 = vpop.f32.mrf.mxu0
    %v418 = vadd.f32 0.0, %v417
    %v419 = vpop.f32.mrf.mxu0
    %v420 = vadd.f32 0.0, %v419
    %421 = vdwg.mxu0
    %v424 = vunpack.c.l.b16 %v345
    %v425 = vunpack.c.l.b16 %v346
    %v426 = vpack.c.b16 %v425, %v424
    %427 = vrot.lane.b32.xlu0 %v227, 64
    %v428 = vpop.permute.xlu0 %427
    %v431 = vsel %vm250, %v426, 0
    %433 = vmatpush.bf16.msra.mxu0 0
    %434 = vmatpush.bf16.msra.mxu0 0
    %435 = vmatpush.bf16.msra.mxu0 0
    %436 = vmatpush.bf16.msra.mxu0 0
    %437 = vmatpush.bf16.msra.mxu0 0
    %438 = vmatpush.bf16.msra.mxu0 0
    %439 = vmatpush.bf16.msra.mxu0 0
    %440 = vmatpush.bf16.msra.mxu0 %v428
    %441 = vmatmul.bf16.gmra.mxu0 %v431
    %v442 = vpop.f32.mrf.mxu0
    %v443 = vadd.f32 0.0, %v442
    %v444 = vpop.f32.mrf.mxu0
    %v445 = vadd.f32 0.0, %v444
    %446 = vdwg.mxu0
    %v447 = vpack.c.bf16 %v368, %v368
    %v448 = vpack.c.bf16 %v370, %v370
    %v449 = vpack.c.bf16 %v393, %v393
    %v450 = vpack.c.bf16 %v395, %v395
    %v451 = vpack.c.bf16 %v418, %v418
    %v452 = vpack.c.bf16 %v420, %v420
    %v453 = vpack.c.bf16 %v443, %v443
    %v454 = vpack.c.bf16 %v445, %v445
    %v455 = vld [vmem:[#allocation2 + $0x8] sm:$0xf]
    %v456 = vld [vmem:[#allocation2 + $0x20] sm:$0xf]
    %v457 = vld [vmem:[#allocation2 + $0x38] sm:$0xf]
    %v458 = vld [vmem:[#allocation2 + $0x50] sm:$0xf]
    %v461 = vunpack.c.l.b16 %v447
    %v462 = vunpack.c.l.b16 %v448
    %v463 = vpack.c.b16 %v462, %v461
    %v465 = vsel %vm148, %v463, 0
    %vm467 = vcmask 1043456
    %v469 = vsel %vm467, %v455, 0
    %471 = vmatpush.bf16.msra.mxu0 0
    %472 = vmatpush.bf16.msra.mxu0 0
    %473 = vmatpush.bf16.msra.mxu0 0
    %474 = vmatpush.bf16.msra.mxu0 0
    %475 = vmatpush.bf16.msra.mxu0 0
    %476 = vmatpush.bf16.msra.mxu0 0
    %477 = vmatpush.bf16.msra.mxu0 0
    %478 = vmatpush.bf16.msra.mxu0 %v469
    %479 = vmatmul.bf16.gmra.mxu0 %v465
    %v480 = vpop.f32.mrf.mxu0
    %v481 = vadd.f32 0.0, %v480
    %v482 = vpop.f32.mrf.mxu0
    %v483 = vadd.f32 0.0, %v482
    %484 = vdwg.mxu0
    %v487 = vunpack.c.l.b16 %v449
    %v488 = vunpack.c.l.b16 %v450
    %v489 = vpack.c.b16 %v488, %v487
    %v491 = vsel %vm148, %v489, 0
    %v494 = vsel %vm467, %v456, 0
    %496 = vmatpush.bf16.msra.mxu0 0
    %497 = vmatpush.bf16.msra.mxu0 0
    %498 = vmatpush.bf16.msra.mxu0 0
    %499 = vmatpush.bf16.msra.mxu0 0
    %500 = vmatpush.bf16.msra.mxu0 0
    %501 = vmatpush.bf16.msra.mxu0 0
    %502 = vmatpush.bf16.msra.mxu0 0
    %503 = vmatpush.bf16.msra.mxu0 %v494
    %504 = vmatmul.bf16.gmra.mxu0 %v491
    %v505 = vpop.f32.mrf.mxu0
    %v506 = vadd.f32 0.0, %v505
    %v507 = vpop.f32.mrf.mxu0
    %v508 = vadd.f32 0.0, %v507
    %509 = vdwg.mxu0
    %v512 = vunpack.c.l.b16 %v451
    %v513 = vunpack.c.l.b16 %v452
    %v514 = vpack.c.b16 %v513, %v512
    %v516 = vsel %vm148, %v514, 0
    %v519 = vsel %vm467, %v457, 0
    %521 = vmatpush.bf16.msra.mxu0 0
    %522 = vmatpush.bf16.msra.mxu0 0
    %523 = vmatpush.bf16.msra.mxu0 0
    %524 = vmatpush.bf16.msra.mxu0 0
    %525 = vmatpush.bf16.msra.mxu0 0
    %526 = vmatpush.bf16.msra.mxu0 0
    %527 = vmatpush.bf16.msra.mxu0 0
    %528 = vmatpush.bf16.msra.mxu0 %v519
    %529 = vmatmul.bf16.gmra.mxu0 %v516
    %v530 = vpop.f32.mrf.mxu0
    %v531 = vadd.f32 0.0, %v530
    %v532 = vpop.f32.mrf.mxu0
    %v533 = vadd.f32 0.0, %v532
    %534 = vdwg.mxu0
    %v537 = vunpack.c.l.b16 %v453
    %v538 = vunpack.c.l.b16 %v454
    %v539 = vpack.c.b16 %v538, %v537
    %v541 = vsel %vm148, %v539, 0
    %v544 = vsel %vm467, %v458, 0
    %546 = vmatpush.bf16.msra.mxu0 0
    %547 = vmatpush.bf16.msra.mxu0 0
    %548 = vmatpush.bf16.msra.mxu0 0
    %549 = vmatpush.bf16.msra.mxu0 0
    %550 = vmatpush.bf16.msra.mxu0 0
    %551 = vmatpush.bf16.msra.mxu0 0
    %552 = vmatpush.bf16.msra.mxu0 0
    %553 = vmatpush.bf16.msra.mxu0 %v544
    %554 = vmatmul.bf16.gmra.mxu0 %v541
    %v555 = vpop.f32.mrf.mxu0
    %v556 = vadd.f32 0.0, %v555
    %v557 = vpop.f32.mrf.mxu0
    %v558 = vadd.f32 0.0, %v557
    %559 = vdwg.mxu0
    %v560 = vld [vmem:[%s2 + $0x2] sm:$0x1]
    %v561 = vperm.slane %v560, 0
    %v562 = vadd.f32 %v561, %v481
    %v563 = vadd.f32 %v561, %v483
    %v564 = vadd.f32 %v562, %v506
    %v565 = vadd.f32 %v563, %v508
    %v566 = vadd.f32 %v564, %v531
    %v567 = vadd.f32 %v565, %v533
    %v568 = vadd.f32 %v566, %v556
    %v569 = vadd.f32 %v567, %v558
    %v570 = vadd.f32 %v568, %v32
    %v571 = vadd.f32 %v569, %v33
    %v572 = vsel %vm62, %v570, 0.0
    %573 = vadd.xlane.f32.xlu0 %v572
    %v574 = vpop.xlane.xlu0 %573
    %v575 = vsel %vm62, %v571, 0.0
    %576 = vadd.xlane.f32.xlu0 %v575
    %v577 = vpop.xlane.xlu0 %576
    %v578 = vrcp.pop 32.0
    %v579 = vmul.f32 32.0, %v578
    %v580 = vsub.f32 1.0, %v579
    %v581 = vmul.f32 %v578, %v580
    %v582 = vadd.f32 %v578, %v581
    %vm583 = vweird.f32 %v578
    %v584 = vsel %vm583, %v578, %v582
    %v585 = vmul.f32 %v574, %v584
    %v586 = vmul.f32 %v577, %v584
    %v587 = vmul.f32 %v570, %v570
    %v588 = vmul.f32 %v571, %v571
    %v589 = vsel %vm62, %v587, 0.0
    %590 = vadd.xlane.f32.xlu0 %v589
    %v591 = vpop.xlane.xlu0 %590
    %v592 = vsel %vm62, %v588, 0.0
    %593 = vadd.xlane.f32.xlu0 %v592
    %v594 = vpop.xlane.xlu0 %593
    %v595 = vmul.f32 %v591, %v584
    %v596 = vmul.f32 %v594, %v584
    %v597 = vmul.f32 %v585, %v585
    %v598 = vmul.f32 %v586, %v586
    %v599 = vsub.f32 %v595, %v597
    %v600 = vsub.f32 %v596, %v598
    %v601 = vmax.f32 %v599, 0.0
    %v602 = vmax.f32 %v600, 0.0
    %v603 = vsub.f32 %v570, %v585
    %v604 = vsub.f32 %v571, %v586
    %v605 = vadd.f32 %v601, 1e-06
    %v606 = vadd.f32 %v602, 1e-06
    %v607 = vrsqrt.pop %v605
    %v608 = vmul.f32 %v607, %v605
    %v609 = vmul.f32 %v608, %v607
    %v610 = vmul.f32 0.5, %v609
    %v611 = vsub.f32 1.5, %v610
    %v612 = vmul.f32 %v607, %v611
    %vm613 = vweird.f32 %v605
    %vm614 = vweird.f32 %v607
    %vm615 = vmor %vm613, %vm614
    %v616 = vsel %vm615, %v607, %v612
    %v617 = vrsqrt.pop %v606
    %v618 = vmul.f32 %v617, %v606
    %v619 = vmul.f32 %v618, %v617
    %v620 = vmul.f32 0.5, %v619
    %v621 = vsub.f32 1.5, %v620
    %v622 = vmul.f32 %v617, %v621
    %vm623 = vweird.f32 %v606
    %vm624 = vweird.f32 %v617
    %vm625 = vmor %vm623, %vm624
    %v626 = vsel %vm625, %v617, %v622
    %v627 = vmul.f32 %v603, %v616
    %v628 = vmul.f32 %v604, %v626
    %v629 = vld [vmem:[%s2 + $0x6] sm:$0x1]
    %v630 = vperm.slane %v629, 0
    %v631 = vmul.f32 %v627, %v630
    %v632 = vmul.f32 %v628, %v630
    %v633 = vld [vmem:[%s2 + $0x7] sm:$0x1]
    %v634 = vperm.slane %v633, 0
    %v635 = vadd.f32 %v631, %v634
    %v636 = vadd.f32 %v632, %v634
    %639 = vrot.lane.b32.xlu0 %v109, 120
    %v640 = vpop.permute.xlu0 %639
    %641 = vrot.lane.b32.xlu0 %v110, 120
    %v642 = vpop.permute.xlu0 %641
    %645 = vrot.lane.b32.xlu0 %v109, 112
    %v646 = vpop.permute.xlu0 %645
    %647 = vrot.lane.b32.xlu0 %v110, 112
    %v648 = vpop.permute.xlu0 %647
    %651 = vrot.lane.b32.xlu0 %v109, 104
    %v652 = vpop.permute.xlu0 %651
    %653 = vrot.lane.b32.xlu0 %v110, 104
    %v654 = vpop.permute.xlu0 %653
    %v657 = vpack.c.bf16 %v109, %v109
    %v658 = vpack.c.bf16 %v110, %v110
    %v659 = vpack.c.bf16 %v640, %v640
    %v660 = vpack.c.bf16 %v642, %v642
    %v661 = vpack.c.bf16 %v646, %v646
    %v662 = vpack.c.bf16 %v648, %v648
    %v663 = vpack.c.bf16 %v652, %v652
    %v664 = vpack.c.bf16 %v654, %v654
    %v667 = vunpack.c.l.b16 %v657
    %v668 = vunpack.c.l.b16 %v658
    %v669 = vpack.c.b16 %v668, %v667
    %670 = vrot.lane.b32.xlu0 %v669, 96
    %v671 = vpop.permute.xlu0 %670
    %v673 = vsel %vm148, %v669, 0
    %v676 = vsel %vm148, %v671, 0
    %678 = vmatpush.bf16.xpose.msra.mxu0 0
    %679 = vmatpush.bf16.xpose.msra.mxu0 0
    %680 = vmatpush.bf16.xpose.msra.mxu0 0
    %681 = vmatpush.bf16.xpose.msra.mxu0 0
    %682 = vmatpush.bf16.xpose.msra.mxu0 0
    %683 = vmatpush.bf16.xpose.msra.mxu0 0
    %684 = vmatpush.bf16.xpose.msra.mxu0 0
    %685 = vmatpush.bf16.xpose.msra.mxu0 %v676
    %686 = vmatmul.bf16.gmra.mxu0 %v673
    %v687 = vpop.f32.mrf.mxu0
    %v688 = vadd.f32 %v111, %v687
    %v689 = vpop.f32.mrf.mxu0
    %v690 = vadd.f32 %v112, %v689
    %691 = vdwg.mxu0
    %v694 = vunpack.c.l.b16 %v659
    %v695 = vunpack.c.l.b16 %v660
    %v696 = vpack.c.b16 %v695, %v694
    %697 = vrot.lane.b32.xlu0 %v696, 96
    %v698 = vpop.permute.xlu0 %697
    %v700 = vsel %vm148, %v696, 0
    %v703 = vsel %vm148, %v698, 0
    %705 = vmatpush.bf16.xpose.msra.mxu0 0
    %706 = vmatpush.bf16.xpose.msra.mxu0 0
    %707 = vmatpush.bf16.xpose.msra.mxu0 0
    %708 = vmatpush.bf16.xpose.msra.mxu0 0
    %709 = vmatpush.bf16.xpose.msra.mxu0 0
    %710 = vmatpush.bf16.xpose.msra.mxu0 0
    %711 = vmatpush.bf16.xpose.msra.mxu0 0
    %712 = vmatpush.bf16.xpose.msra.mxu0 %v703
    %713 = vmatmul.bf16.gmra.mxu0 %v700
    %v714 = vpop.f32.mrf.mxu0
    %v715 = vadd.f32 %v111, %v714
    %v716 = vpop.f32.mrf.mxu0
    %v717 = vadd.f32 %v112, %v716
    %718 = vdwg.mxu0
    %v721 = vunpack.c.l.b16 %v661
    %v722 = vunpack.c.l.b16 %v662
    %v723 = vpack.c.b16 %v722, %v721
    %724 = vrot.lane.b32.xlu0 %v723, 96
    %v725 = vpop.permute.xlu0 %724
    %v727 = vsel %vm148, %v723, 0
    %v730 = vsel %vm148, %v725, 0
    %732 = vmatpush.bf16.xpose.msra.mxu0 0
    %733 = vmatpush.bf16.xpose.msra.mxu0 0
    %734 = vmatpush.bf16.xpose.msra.mxu0 0
    %735 = vmatpush.bf16.xpose.msra.mxu0 0
    %736 = vmatpush.bf16.xpose.msra.mxu0 0
    %737 = vmatpush.bf16.xpose.msra.mxu0 0
    %738 = vmatpush.bf16.xpose.msra.mxu0 0
    %739 = vmatpush.bf16.xpose.msra.mxu0 %v730
    %740 = vmatmul.bf16.gmra.mxu0 %v727
    %v741 = vpop.f32.mrf.mxu0
    %v742 = vadd.f32 %v111, %v741
    %v743 = vpop.f32.mrf.mxu0
    %v744 = vadd.f32 %v112, %v743
    %745 = vdwg.mxu0
    %v748 = vunpack.c.l.b16 %v663
    %v749 = vunpack.c.l.b16 %v664
    %v750 = vpack.c.b16 %v749, %v748
    %751 = vrot.lane.b32.xlu0 %v750, 96
    %v752 = vpop.permute.xlu0 %751
    %v754 = vsel %vm148, %v750, 0
    %v757 = vsel %vm148, %v752, 0
    %759 = vmatpush.bf16.xpose.msra.mxu0 0
    %760 = vmatpush.bf16.xpose.msra.mxu0 0
    %761 = vmatpush.bf16.xpose.msra.mxu0 0
    %762 = vmatpush.bf16.xpose.msra.mxu0 0
    %763 = vmatpush.bf16.xpose.msra.mxu0 0
    %764 = vmatpush.bf16.xpose.msra.mxu0 0
    %765 = vmatpush.bf16.xpose.msra.mxu0 0
    %766 = vmatpush.bf16.xpose.msra.mxu0 %v757
    %767 = vmatmul.bf16.gmra.mxu0 %v754
    %v768 = vpop.f32.mrf.mxu0
    %v769 = vadd.f32 %v111, %v768
    %v770 = vpop.f32.mrf.mxu0
    %v771 = vadd.f32 %v112, %v770
    %772 = vdwg.mxu0
    %v773 = vsel %vm250, %v688, -inf
    %774 = vmax.xlane.f32.xlu0 %v773
    %v775 = vpop.xlane.xlu0 %774
    %v776 = vsel %vm250, %v690, -inf
    %777 = vmax.xlane.f32.xlu0 %v776
    %v778 = vpop.xlane.xlu0 %777
    %v779 = vsel %vm250, %v715, -inf
    %780 = vmax.xlane.f32.xlu0 %v779
    %v781 = vpop.xlane.xlu0 %780
    %v782 = vsel %vm250, %v717, -inf
    %783 = vmax.xlane.f32.xlu0 %v782
    %v784 = vpop.xlane.xlu0 %783
    %v785 = vsel %vm250, %v742, -inf
    %786 = vmax.xlane.f32.xlu0 %v785
    %v787 = vpop.xlane.xlu0 %786
    %v788 = vsel %vm250, %v744, -inf
    %789 = vmax.xlane.f32.xlu0 %v788
    %v790 = vpop.xlane.xlu0 %789
    %v791 = vsel %vm250, %v769, -inf
    %792 = vmax.xlane.f32.xlu0 %v791
    %v793 = vpop.xlane.xlu0 %792
    %v794 = vsel %vm250, %v771, -inf
    %795 = vmax.xlane.f32.xlu0 %v794
    %v796 = vpop.xlane.xlu0 %795
    %v797 = vsub.f32 %v688, %v775
    %v798 = vsub.f32 %v690, %v778
    %v799 = vsub.f32 %v715, %v781
    %v800 = vsub.f32 %v717, %v784
    %v801 = vsub.f32 %v742, %v787
    %v802 = vsub.f32 %v744, %v790
    %v803 = vsub.f32 %v769, %v793
    %v804 = vsub.f32 %v771, %v796
    %v805 = vmul.f32 %v797, 1.442695
    %v806 = vpow.pop %v805
    %v807 = vmul.f32 %v798, 1.442695
    %v808 = vpow.pop %v807
    %v809 = vmul.f32 %v799, 1.442695
    %v810 = vpow.pop %v809
    %v811 = vmul.f32 %v800, 1.442695
    %v812 = vpow.pop %v811
    %v813 = vmul.f32 %v801, 1.442695
    %v814 = vpow.pop %v813
    %v815 = vmul.f32 %v802, 1.442695
    %v816 = vpow.pop %v815
    %v817 = vmul.f32 %v803, 1.442695
    %v818 = vpow.pop %v817
    %v819 = vmul.f32 %v804, 1.442695
    %v820 = vpow.pop %v819
    %v821 = vsel %vm250, %v806, 0.0
    %822 = vadd.xlane.f32.xlu0 %v821
    %v823 = vpop.xlane.xlu0 %822
    %v824 = vsel %vm250, %v808, 0.0
    %825 = vadd.xlane.f32.xlu0 %v824
    %v826 = vpop.xlane.xlu0 %825
    %v827 = vsel %vm250, %v810, 0.0
    %828 = vadd.xlane.f32.xlu0 %v827
    %v829 = vpop.xlane.xlu0 %828
    %v830 = vsel %vm250, %v812, 0.0
    %831 = vadd.xlane.f32.xlu0 %v830
    %v832 = vpop.xlane.xlu0 %831
    %v833 = vsel %vm250, %v814, 0.0
    %834 = vadd.xlane.f32.xlu0 %v833
    %v835 = vpop.xlane.xlu0 %834
    %v836 = vsel %vm250, %v816, 0.0
    %837 = vadd.xlane.f32.xlu0 %v836
    %v838 = vpop.xlane.xlu0 %837
    %v839 = vsel %vm250, %v818, 0.0
    %840 = vadd.xlane.f32.xlu0 %v839
    %v841 = vpop.xlane.xlu0 %840
    %v842 = vsel %vm250, %v820, 0.0
    %843 = vadd.xlane.f32.xlu0 %v842
    %v844 = vpop.xlane.xlu0 %843
    %v845 = vrcp.pop %v823
    %v846 = vrcp.pop %v826
    %v847 = vrcp.pop %v829
    %v848 = vrcp.pop %v832
    %v849 = vrcp.pop %v835
    %v850 = vrcp.pop %v838
    %v851 = vrcp.pop %v841
    %v852 = vrcp.pop %v844
    %v853 = vmul.f32 %v806, %v845
    %v854 = vmul.f32 %v808, %v846
    %v855 = vmul.f32 %v810, %v847
    %v856 = vmul.f32 %v812, %v848
    %v857 = vmul.f32 %v814, %v849
    %v858 = vmul.f32 %v816, %v850
    %v859 = vmul.f32 %v818, %v851
    %v860 = vmul.f32 %v820, %v852
    %v861 = vpack.c.bf16 %v853, %v853
    %v862 = vpack.c.bf16 %v854, %v854
    %v863 = vpack.c.bf16 %v855, %v855
    %v864 = vpack.c.bf16 %v856, %v856
    %v865 = vpack.c.bf16 %v857, %v857
    %v866 = vpack.c.bf16 %v858, %v858
    %v867 = vpack.c.bf16 %v859, %v859
    %v868 = vpack.c.bf16 %v860, %v860
    %v871 = vunpack.c.l.b16 %v861
    %v872 = vunpack.c.l.b16 %v862
    %v873 = vpack.c.b16 %v872, %v871
    %874 = vrot.lane.b32.xlu0 %v145, 32
    %v875 = vpop.permute.xlu0 %874
    %v878 = vsel %vm250, %v873, 0
    %880 = vmatpush.bf16.msra.mxu0 0
    %881 = vmatpush.bf16.msra.mxu0 0
    %882 = vmatpush.bf16.msra.mxu0 0
    %883 = vmatpush.bf16.msra.mxu0 0
    %884 = vmatpush.bf16.msra.mxu0 0
    %885 = vmatpush.bf16.msra.mxu0 0
    %886 = vmatpush.bf16.msra.mxu0 0
    %887 = vmatpush.bf16.msra.mxu0 %v875
    %888 = vmatmul.bf16.gmra.mxu0 %v878
    %v889 = vpop.f32.mrf.mxu0
    %v890 = vadd.f32 0.0, %v889
    %v891 = vpop.f32.mrf.mxu0
    %v892 = vadd.f32 0.0, %v891
    %893 = vdwg.mxu0
    %v896 = vunpack.c.l.b16 %v863
    %v897 = vunpack.c.l.b16 %v864
    %v898 = vpack.c.b16 %v897, %v896
    %899 = vrot.lane.b32.xlu0 %v173, 32
    %v900 = vpop.permute.xlu0 %899
    %v903 = vsel %vm250, %v898, 0
    %905 = vmatpush.bf16.msra.mxu0 0
    %906 = vmatpush.bf16.msra.mxu0 0
    %907 = vmatpush.bf16.msra.mxu0 0
    %908 = vmatpush.bf16.msra.mxu0 0
    %909 = vmatpush.bf16.msra.mxu0 0
    %910 = vmatpush.bf16.msra.mxu0 0
    %911 = vmatpush.bf16.msra.mxu0 0
    %912 = vmatpush.bf16.msra.mxu0 %v900
    %913 = vmatmul.bf16.gmra.mxu0 %v903
    %v914 = vpop.f32.mrf.mxu0
    %v915 = vadd.f32 0.0, %v914
    %v916 = vpop.f32.mrf.mxu0
    %v917 = vadd.f32 0.0, %v916
    %918 = vdwg.mxu0
    %v921 = vunpack.c.l.b16 %v865
    %v922 = vunpack.c.l.b16 %v866
    %v923 = vpack.c.b16 %v922, %v921
    %924 = vrot.lane.b32.xlu0 %v200, 32
    %v925 = vpop.permute.xlu0 %924
    %v928 = vsel %vm250, %v923, 0
    %930 = vmatpush.bf16.msra.mxu0 0
    %931 = vmatpush.bf16.msra.mxu0 0
    %932 = vmatpush.bf16.msra.mxu0 0
    %933 = vmatpush.bf16.msra.mxu0 0
    %934 = vmatpush.bf16.msra.mxu0 0
    %935 = vmatpush.bf16.msra.mxu0 0
    %936 = vmatpush.bf16.msra.mxu0 0
    %937 = vmatpush.bf16.msra.mxu0 %v925
    %938 = vmatmul.bf16.gmra.mxu0 %v928
    %v939 = vpop.f32.mrf.mxu0
    %v940 = vadd.f32 0.0, %v939
    %v941 = vpop.f32.mrf.mxu0
    %v942 = vadd.f32 0.0, %v941
    %943 = vdwg.mxu0
    %v946 = vunpack.c.l.b16 %v867
    %v947 = vunpack.c.l.b16 %v868
    %v948 = vpack.c.b16 %v947, %v946
    %949 = vrot.lane.b32.xlu0 %v227, 32
    %v950 = vpop.permute.xlu0 %949
    %v953 = vsel %vm250, %v948, 0
    %955 = vmatpush.bf16.msra.mxu0 0
    %956 = vmatpush.bf16.msra.mxu0 0
    %957 = vmatpush.bf16.msra.mxu0 0
    %958 = vmatpush.bf16.msra.mxu0 0
    %959 = vmatpush.bf16.msra.mxu0 0
    %960 = vmatpush.bf16.msra.mxu0 0
    %961 = vmatpush.bf16.msra.mxu0 0
    %962 = vmatpush.bf16.msra.mxu0 %v950
    %963 = vmatmul.bf16.gmra.mxu0 %v953
    %v964 = vpop.f32.mrf.mxu0
    %v965 = vadd.f32 0.0, %v964
    %v966 = vpop.f32.mrf.mxu0
    %v967 = vadd.f32 0.0, %v966
    %968 = vdwg.mxu0
    %v969 = vpack.c.bf16 %v890, %v890
    %v970 = vpack.c.bf16 %v892, %v892
    %v971 = vpack.c.bf16 %v915, %v915
    %v972 = vpack.c.bf16 %v917, %v917
    %v973 = vpack.c.bf16 %v940, %v940
    %v974 = vpack.c.bf16 %v942, %v942
    %v975 = vpack.c.bf16 %v965, %v965
    %v976 = vpack.c.bf16 %v967, %v967
    %v977 = vld [vmem:[#allocation2 + $0xc] sm:$0xf]
    %v978 = vld [vmem:[#allocation2 + $0x24] sm:$0xf]
    %v979 = vld [vmem:[#allocation2 + $0x3c] sm:$0xf]
    %v980 = vld [vmem:[#allocation2 + $0x54] sm:$0xf]
    %v983 = vunpack.c.l.b16 %v969
    %v984 = vunpack.c.l.b16 %v970
    %v985 = vpack.c.b16 %v984, %v983
    %v987 = vsel %vm148, %v985, 0
    %v990 = vsel %vm467, %v977, 0
    %992 = vmatpush.bf16.msra.mxu0 0
    %993 = vmatpush.bf16.msra.mxu0 0
    %994 = vmatpush.bf16.msra.mxu0 0
    %995 = vmatpush.bf16.msra.mxu0 0
    %996 = vmatpush.bf16.msra.mxu0 0
    %997 = vmatpush.bf16.msra.mxu0 0
    %998 = vmatpush.bf16.msra.mxu0 0
    %999 = vmatpush.bf16.msra.mxu0 %v990
    %1000 = vmatmul.bf16.gmra.mxu0 %v987
    %v1001 = vpop.f32.mrf.mxu0
    %v1002 = vadd.f32 0.0, %v1001
    %v1003 = vpop.f32.mrf.mxu0
    %v1004 = vadd.f32 0.0, %v1003
    %1005 = vdwg.mxu0
    %v1008 = vunpack.c.l.b16 %v971
    %v1009 = vunpack.c.l.b16 %v972
    %v1010 = vpack.c.b16 %v1009, %v1008
    %v1012 = vsel %vm148, %v1010, 0
    %v1015 = vsel %vm467, %v978, 0
    %1017 = vmatpush.bf16.msra.mxu0 0
    %1018 = vmatpush.bf16.msra.mxu0 0
    %1019 = vmatpush.bf16.msra.mxu0 0
    %1020 = vmatpush.bf16.msra.mxu0 0
    %1021 = vmatpush.bf16.msra.mxu0 0
    %1022 = vmatpush.bf16.msra.mxu0 0
    %1023 = vmatpush.bf16.msra.mxu0 0
    %1024 = vmatpush.bf16.msra.mxu0 %v1015
    %1025 = vmatmul.bf16.gmra.mxu0 %v1012
    %v1026 = vpop.f32.mrf.mxu0
    %v1027 = vadd.f32 0.0, %v1026
    %v1028 = vpop.f32.mrf.mxu0
    %v1029 = vadd.f32 0.0, %v1028
    %1030 = vdwg.mxu0
    %v1033 = vunpack.c.l.b16 %v973
    %v1034 = vunpack.c.l.b16 %v974
    %v1035 = vpack.c.b16 %v1034, %v1033
    %v1037 = vsel %vm148, %v1035, 0
    %v1040 = vsel %vm467, %v979, 0
    %1042 = vmatpush.bf16.msra.mxu0 0
    %1043 = vmatpush.bf16.msra.mxu0 0
    %1044 = vmatpush.bf16.msra.mxu0 0
    %1045 = vmatpush.bf16.msra.mxu0 0
    %1046 = vmatpush.bf16.msra.mxu0 0
    %1047 = vmatpush.bf16.msra.mxu0 0
    %1048 = vmatpush.bf16.msra.mxu0 0
    %1049 = vmatpush.bf16.msra.mxu0 %v1040
    %1050 = vmatmul.bf16.gmra.mxu0 %v1037
    %v1051 = vpop.f32.mrf.mxu0
    %v1052 = vadd.f32 0.0, %v1051
    %v1053 = vpop.f32.mrf.mxu0
    %v1054 = vadd.f32 0.0, %v1053
    %1055 = vdwg.mxu0
    %v1058 = vunpack.c.l.b16 %v975
    %v1059 = vunpack.c.l.b16 %v976
    %v1060 = vpack.c.b16 %v1059, %v1058
    %v1062 = vsel %vm148, %v1060, 0
    %v1065 = vsel %vm467, %v980, 0
    %1067 = vmatpush.bf16.msra.mxu0 0
    %1068 = vmatpush.bf16.msra.mxu0 0
    %1069 = vmatpush.bf16.msra.mxu0 0
    %1070 = vmatpush.bf16.msra.mxu0 0
    %1071 = vmatpush.bf16.msra.mxu0 0
    %1072 = vmatpush.bf16.msra.mxu0 0
    %1073 = vmatpush.bf16.msra.mxu0 0
    %1074 = vmatpush.bf16.msra.mxu0 %v1065
    %1075 = vmatmul.bf16.gmra.mxu0 %v1062
    %v1076 = vpop.f32.mrf.mxu0
    %v1077 = vadd.f32 0.0, %v1076
    %v1078 = vpop.f32.mrf.mxu0
    %v1079 = vadd.f32 0.0, %v1078
    %1080 = vdwg.mxu0
    %v1081 = vld [vmem:[%s2 + $0x3] sm:$0x1]
    %v1082 = vperm.slane %v1081, 0
    %v1083 = vadd.f32 %v1082, %v1002
    %v1084 = vadd.f32 %v1082, %v1004
    %v1085 = vadd.f32 %v1083, %v1027
    %v1086 = vadd.f32 %v1084, %v1029
    %v1087 = vadd.f32 %v1085, %v1052
    %v1088 = vadd.f32 %v1086, %v1054
    %v1089 = vadd.f32 %v1087, %v1077
    %v1090 = vadd.f32 %v1088, %v1079
    %v1091 = vadd.f32 %v1089, %v635
    %v1092 = vadd.f32 %v1090, %v636
    %v1093 = vsel %vm62, %v1091, 0.0
    %1094 = vadd.xlane.f32.xlu0 %v1093
    %v1095 = vpop.xlane.xlu0 %1094
    %v1096 = vsel %vm62, %v1092, 0.0
    %1097 = vadd.xlane.f32.xlu0 %v1096
    %v1098 = vpop.xlane.xlu0 %1097
    %v1099 = vmul.f32 %v1095, %v584
    %v1100 = vmul.f32 %v1098, %v584
    %v1101 = vmul.f32 %v1091, %v1091
    %v1102 = vmul.f32 %v1092, %v1092
    %v1103 = vsel %vm62, %v1101, 0.0
    %1104 = vadd.xlane.f32.xlu0 %v1103
    %v1105 = vpop.xlane.xlu0 %1104
    %v1106 = vsel %vm62, %v1102, 0.0
    %1107 = vadd.xlane.f32.xlu0 %v1106
    %v1108 = vpop.xlane.xlu0 %1107
    %v1109 = vmul.f32 %v1105, %v584
    %v1110 = vmul.f32 %v1108, %v584
    %v1111 = vmul.f32 %v1099, %v1099
    %v1112 = vmul.f32 %v1100, %v1100
    %v1113 = vsub.f32 %v1109, %v1111
    %v1114 = vsub.f32 %v1110, %v1112
    %v1115 = vmax.f32 %v1113, 0.0
    %v1116 = vmax.f32 %v1114, 0.0
    %v1117 = vsub.f32 %v1091, %v1099
    %v1118 = vsub.f32 %v1092, %v1100
    %v1119 = vadd.f32 %v1115, 1e-06
    %v1120 = vadd.f32 %v1116, 1e-06
    %v1121 = vrsqrt.pop %v1119
    %v1122 = vmul.f32 %v1121, %v1119
    %v1123 = vmul.f32 %v1122, %v1121
    %v1124 = vmul.f32 0.5, %v1123
    %v1125 = vsub.f32 1.5, %v1124
    %v1126 = vmul.f32 %v1121, %v1125
    %vm1127 = vweird.f32 %v1119
    %vm1128 = vweird.f32 %v1121
    %vm1129 = vmor %vm1127, %vm1128
    %v1130 = vsel %vm1129, %v1121, %v1126
    %v1131 = vrsqrt.pop %v1120
    %v1132 = vmul.f32 %v1131, %v1120
    %v1133 = vmul.f32 %v1132, %v1131
    %v1134 = vmul.f32 0.5, %v1133
    %v1135 = vsub.f32 1.5, %v1134
    %v1136 = vmul.f32 %v1131, %v1135
    %vm1137 = vweird.f32 %v1120
    %vm1138 = vweird.f32 %v1131
    %vm1139 = vmor %vm1137, %vm1138
    %v1140 = vsel %vm1139, %v1131, %v1136
    %v1141 = vmul.f32 %v1117, %v1130
    %v1142 = vmul.f32 %v1118, %v1140
    %v1143 = vld [vmem:[%s2 + $0x8] sm:$0x1]
    %v1144 = vperm.slane %v1143, 0
    %v1145 = vmul.f32 %v1141, %v1144
    %v1146 = vmul.f32 %v1142, %v1144
    %v1147 = vld [vmem:[%s2 + $0x9] sm:$0x1]
    %v1148 = vperm.slane %v1147, 0
    %v1149 = vadd.f32 %v1145, %v1148
    %v1150 = vadd.f32 %v1146, %v1148
    %v1151 = vpack.c.bf16 %v1150, %v1149
    %v1152 = vld [vmem:[#allocation2 + $0x10] sm:$0xf]
    %v1153 = vld [vmem:[#allocation2 + $0x28] sm:$0xf]
    %v1154 = vld [vmem:[#allocation2 + $0x40] sm:$0xf]
    %v1155 = vld [vmem:[#allocation2 + $0x58] sm:$0xf]
    %v1156 = vld [vmem:[%s2 + $0x4] sm:$0x1]
    %v1157 = vperm.slane %v1156, 0
    %v1162 = vunpack.c.l.b16 %v1152
    %v1163 = vunpack.c.l.b16 %v1153
    %v1164 = vunpack.c.l.b16 %v1154
    %v1165 = vunpack.c.l.b16 %v1155
    %v1166 = vpack.c.b16 %v1163, %v1162
    %v1167 = vpack.c.b16 %v1165, %v1164
    %v1171 = vsel %vm62, %v1151, 0
    %1173 = vmatpush.bf16.msra.mxu0 0
    %1174 = vmatpush.bf16.msra.mxu0 0
    %1175 = vmatpush.bf16.msra.mxu0 0
    %1176 = vmatpush.bf16.msra.mxu0 0
    %1177 = vmatpush.bf16.msra.mxu0 0
    %1178 = vmatpush.bf16.msra.mxu0 0
    %1179 = vmatpush.bf16.msra.mxu0 %v1167
    %1180 = vmatpush.bf16.msra.mxu0 %v1166
    %1181 = vmatmul.bf16.gmra.mxu0 %v1171
    %v1182 = vpop.f32.mrf.mxu0
    %v1183 = vadd.f32 %v1157, %v1182
    %v1184 = vpop.f32.mrf.mxu0
    %v1185 = vadd.f32 %v1157, %v1184
    %1186 = vdwg.mxu0
    %v1187 = vmax.f32 %v1183, 0.0
    %v1188 = vmax.f32 %v1185, 0.0
    %v1189 = vpack.c.bf16 %v1188, %v1187
    %v1190 = vld [vmem:[#allocation2 + $0x14] sm:$0xf]
    %v1191 = vld [vmem:[#allocation2 + $0x2c] sm:$0xf]
    %v1192 = vld [vmem:[#allocation2 + $0x44] sm:$0xf]
    %v1193 = vld [vmem:[#allocation2 + $0x5c] sm:$0xf]
    %v1194 = vld [vmem:[%s2 + $0x5] sm:$0x1]
    %v1195 = vperm.slane %v1194, 0
    %v1200 = vunpack.c.l.b16 %v1190
    %v1201 = vunpack.c.l.b16 %v1191
    %v1202 = vunpack.c.l.b16 %v1192
    %v1203 = vunpack.c.l.b16 %v1193
    %v1204 = vpack.c.b16 %v1201, %v1200
    %v1205 = vpack.c.b16 %v1203, %v1202
    %v1209 = vsel %vm62, %v1189, 0
    %1211 = vmatpush.bf16.msra.mxu0 0
    %1212 = vmatpush.bf16.msra.mxu0 0
    %1213 = vmatpush.bf16.msra.mxu0 0
    %1214 = vmatpush.bf16.msra.mxu0 0
    %1215 = vmatpush.bf16.msra.mxu0 0
    %1216 = vmatpush.bf16.msra.mxu0 0
    %1217 = vmatpush.bf16.msra.mxu0 %v1205
    %1218 = vmatpush.bf16.msra.mxu0 %v1204
    %1219 = vmatmul.bf16.gmra.mxu0 %v1209
    %v1220 = vpop.f32.mrf.mxu0
    %v1221 = vadd.f32 %v1195, %v1220
    %v1222 = vpop.f32.mrf.mxu0
    %v1223 = vadd.f32 %v1195, %v1222
    %1224 = vdwg.mxu0
    %v1225 = vadd.f32 %v1221, %v1149
    %v1226 = vadd.f32 %v1223, %v1150
    %v1227 = vsel %vm62, %v1225, 0.0
    %1228 = vadd.xlane.f32.xlu0 %v1227
    %v1229 = vpop.xlane.xlu0 %1228
    %v1230 = vsel %vm62, %v1226, 0.0
    %1231 = vadd.xlane.f32.xlu0 %v1230
    %v1232 = vpop.xlane.xlu0 %1231
    %v1233 = vmul.f32 %v1229, %v584
    %v1234 = vmul.f32 %v1232, %v584
    %v1235 = vmul.f32 %v1225, %v1225
    %v1236 = vmul.f32 %v1226, %v1226
    %v1237 = vsel %vm62, %v1235, 0.0
    %1238 = vadd.xlane.f32.xlu0 %v1237
    %v1239 = vpop.xlane.xlu0 %1238
    %v1240 = vsel %vm62, %v1236, 0.0
    %1241 = vadd.xlane.f32.xlu0 %v1240
    %v1242 = vpop.xlane.xlu0 %1241
    %v1243 = vmul.f32 %v1239, %v584
    %v1244 = vmul.f32 %v1242, %v584
    %v1245 = vmul.f32 %v1233, %v1233
    %v1246 = vmul.f32 %v1234, %v1234
    %v1247 = vsub.f32 %v1243, %v1245
    %v1248 = vsub.f32 %v1244, %v1246
    %v1249 = vmax.f32 %v1247, 0.0
    %v1250 = vmax.f32 %v1248, 0.0
    %v1251 = vsub.f32 %v1225, %v1233
    %v1252 = vsub.f32 %v1226, %v1234
    %v1253 = vadd.f32 %v1249, 1e-06
    %v1254 = vadd.f32 %v1250, 1e-06
    %v1255 = vrsqrt.pop %v1253
    %v1256 = vmul.f32 %v1255, %v1253
    %v1257 = vmul.f32 %v1256, %v1255
    %v1258 = vmul.f32 0.5, %v1257
    %v1259 = vsub.f32 1.5, %v1258
    %v1260 = vmul.f32 %v1255, %v1259
    %vm1261 = vweird.f32 %v1253
    %vm1262 = vweird.f32 %v1255
    %vm1263 = vmor %vm1261, %vm1262
    %v1264 = vsel %vm1263, %v1255, %v1260
    %v1265 = vrsqrt.pop %v1254
    %v1266 = vmul.f32 %v1265, %v1254
    %v1267 = vmul.f32 %v1266, %v1265
    %v1268 = vmul.f32 0.5, %v1267
    %v1269 = vsub.f32 1.5, %v1268
    %v1270 = vmul.f32 %v1265, %v1269
    %vm1271 = vweird.f32 %v1254
    %vm1272 = vweird.f32 %v1265
    %vm1273 = vmor %vm1271, %vm1272
    %v1274 = vsel %vm1273, %v1265, %v1270
    %v1275 = vmul.f32 %v1251, %v1264
    %v1276 = vmul.f32 %v1252, %v1274
    %v1277 = vld [vmem:[%s2 + $0xa] sm:$0x1]
    %v1278 = vperm.slane %v1277, 0
    %v1279 = vmul.f32 %v1275, %v1278
    %v1280 = vmul.f32 %v1276, %v1278
    %v1281 = vld [vmem:[%s2 + $0xb] sm:$0x1]
    %v1282 = vperm.slane %v1281, 0
    %v1283 = vadd.f32 %v1279, %v1282
    %v1284 = vadd.f32 %v1280, %v1282
    %1285 = vst.msk [vmem:[#allocation5] sm:$0xff] %vm62, %v1283
    %1286 = vst.msk [vmem:[#allocation5 + $0x8] sm:$0xff] %vm62, %v1284
    // Predicated region
    $region18: #{_lambda_.1} parent=1 // pred_check
      _
    $region19: #{_lambda_.1} parent=1 // pred_check_branch
      %1288 = sbr.rel (0) target = $region21
    $region20: #{_lambda_.1} parent=1 // pred_region
      %1290 = vsyncadd [#allocation4], 0
      %s1291 = sshll.u32 [#allocation5], 4
      %s1292 = int_to_ptr.vmem [resolvable:$true] %s1291
      %s1293 = sshll.u32 %s3, 4
      %s1294 = int_to_ptr.hbm [resolvable:$true] %s1293
      %1299 = dma.vmem_to_hbm [thread:$0]  %s1292, 256, %s1294, [#allocation4], 128, 128, 8
    $region21: #{_lambda_.1} parent=1 // pred_fallthru
      _
    // Predicated region
    $region22: #{_lambda_.1} parent=1 // pred_check
      _
    $region23: #{_lambda_.1} parent=1 // pred_check_branch
      %1301 = sbr.rel (0) target = $region25
    $region24: #{_lambda_.1} parent=1 // pred_region
      %1303 = dma.done [#allocation4], 256
    $region25: #{_lambda_.1} parent=1 // pred_fallthru
      _
    %1304 = vsyncpa [#allocation3], 1
    %1305 = vsyncpa [#allocation4], 1

</llo_original>
